<compile_context>
chip_gen: v5e
topology: v5e:2x2
jax: 0.10.0
libtpu: 0.0.40
codegen_flags: <defaults>
</compile_context>

<pallas_src>
import jax
import jax.numpy as jnp
from jax import lax
from jax.experimental import pallas as pl
from jax.experimental.pallas import tpu as pltpu

LANE = 128


def _round_up(x, m):
    return ((x + m - 1) // m) * m


def _bf16_vpu_ok():
    """bf16 VALUs exist only on v6e / v7x. Mis-detection only affects perf
    (the elementwise tail would just run via conversions), never correctness."""
    try:
        kind = jax.devices()[0].device_kind.lower()
    except Exception:
        return False
    return not any(tag in kind for tag in ("v2", "v3", "v4", "v5"))


# ----------------------------------------------------------------------------
# Kernel: the whole 7-layer MLP for one batch tile.
#   x_ref : (TB, D)   batch-major input tile (no wrapper-side transpose)
#   refs  : w1, b1, ..., w7, b7, o_ref
#           w1..w6 : (out, in)  PyTorch nn.Linear layout, mxu dtype
#           b1..b6 : (out, 1)   tail dtype (f32, or bf16 on bf16-VPU parts)
#           w7     : (32, 1)    f32, pre-transposed for the VPU reduction
#           b7     : (1, 1)     f32
#   o_ref : (1, TB)   lane-dense output row (batch on lanes)
# ----------------------------------------------------------------------------
def growth_nn_kernel(x_ref, *refs):
    o_ref = refs[-1]
    param_refs = refs[:-1]
    n_layers = len(param_refs) // 2

    mxu_dtype = x_ref.dtype            # f32, or bf16 when use_bf16=True
    tail_dtype = param_refs[1].dtype   # bias dtype encodes elementwise dtype

    x = x_ref[...]                     # (TB, D)

    a = None
    for li in range(n_layers - 1):
        w = param_refs[2 * li][...]        # (out, in)
        b = param_refs[2 * li + 1][...]    # (out, 1)
        if li == 0:
            # Contract the shared feature dim of (out, D) x (TB, D) -> (out, TB):
            # feature-major activation, batch on lanes, no transpose needed.
            y = lax.dot_general(
                w, x, dimension_numbers=(((1,), (1,)), ((), ())),
                preferred_element_type=jnp.float32)
        else:
            y = jnp.dot(w, a, preferred_element_type=jnp.float32)
        # bias-add + ReLU in tail dtype; re-cast for the next layer's MXU input.
        a = jnp.maximum(y.astype(tail_dtype) + b, 0.0).astype(mxu_dtype)

    # Final layer (Linear(32 -> 1) in the spec): avoid a 1-row MXU matmul.
    w_last = param_refs[-2]
    b_last = param_refs[-1]
    if w_last.shape[1] == 1 and w_last.shape[0] == a.shape[0]:
        # (32, 1) f32 weight broadcast over lanes, sublane-reduce on the XLU.
        y = jnp.sum(w_last[...] * a.astype(jnp.float32), axis=0, keepdims=True)
    else:
        y = jnp.dot(w_last[...], a, preferred_element_type=jnp.float32)
    o_ref[...] = (y + b_last[...].astype(jnp.float32)).astype(o_ref.dtype)


# ----------------------------------------------------------------------------
# Wrapper
# ----------------------------------------------------------------------------
def _run_pallas(xb, flat_params, tb, grid):
    b_pad, d = xb.shape
    x_spec = pl.BlockSpec((tb, d), lambda i: (i, 0))
    out_spec = pl.BlockSpec((1, tb), lambda i: (0, i))
    param_specs = [pl.BlockSpec(p.shape, lambda i: (0, 0)) for p in flat_params]

    return pl.pallas_call(
        growth_nn_kernel,
        out_shape=jax.ShapeDtypeStruct((1, b_pad), jnp.float32),
        grid_spec=pltpu.PrefetchScalarGridSpec(
            num_scalar_prefetch=0,
            grid=(grid,),
            in_specs=[x_spec] + param_specs,
            out_specs=out_spec,
        ),
        compiler_params=pltpu.CompilerParams(
            dimension_semantics=("parallel",)),
    )(xb, *flat_params)


def growth_nn_forward(x, params, *, tile_b=2048, use_bf16=True,
                      bf16_elementwise=None):
    """x: (B, D) f32. params: list of (W, b) with W (out, in), b (out, 1)."""
    B, D = x.shape

    # --- pick a lane-aligned batch tile --------------------------------------
    b_lane = _round_up(B, LANE)
    tb = max(LANE, (min(tile_b, b_lane) // LANE) * LANE)
    # v7x megacore: keep >= 2 grid steps whenever the padded batch allows it.
    if _round_up(B, tb) // tb < 2 and b_lane // LANE >= 2:
        tb = max(LANE, (b_lane // 2 // LANE) * LANE)
    b_pad = _round_up(B, tb)
    grid = b_pad // tb

    # --- dtypes ---------------------------------------------------------------
    mxu_dtype = jnp.bfloat16 if use_bf16 else jnp.float32
    if bf16_elementwise is None:
        bf16_elementwise = use_bf16 and _bf16_vpu_ok()
    tail_dtype = jnp.bfloat16 if (use_bf16 and bf16_elementwise) else jnp.float32

    # --- input stays batch-major; pad only if needed --------------------------
    xb = x.astype(mxu_dtype)
    if b_pad != B:
        xb = jnp.pad(xb, ((0, b_pad - B), (0, 0)))

    # --- params ----------------------------------------------------------------
    flat_params = []
    n = len(params)
    for li, (w, b) in enumerate(params):
        last = li == n - 1
        if last and w.shape[0] == 1:
            # Final Linear(·, 1): pre-transposed f32 weight for the VPU reduction.
            flat_params.append(w.astype(jnp.float32).T)       # (in, 1)
            flat_params.append(b.astype(jnp.float32))          # (1, 1)
        else:
            flat_params.append(w.astype(mxu_dtype))
            flat_params.append(b.astype(jnp.float32 if last else tail_dtype))

    out = _run_pallas(xb, flat_params, tb, grid)

    # Drop padded batch columns; return (B, 1) like the PyTorch module.
    return out[0, :B].reshape(B, 1)


# ----------------------------------------------------------------------------
# Deterministic parameter init (PyTorch nn.Linear layout and init range)
# ----------------------------------------------------------------------------
def init_params(key, input_size):
    layer_dims = [input_size, 64, 128, 256, 128, 64, 32, 1]
    params = []
    for li in range(len(layer_dims) - 1):
        fan_in, fan_out = layer_dims[li], layer_dims[li + 1]
        key, kw, kb = jax.random.split(key, 3)
        bound = 1.0 / jnp.sqrt(fan_in)
        w = jax.random.uniform(kw, (fan_out, fan_in), jnp.float32, -bound, bound)
        b = jax.random.uniform(kb, (fan_out, 1), jnp.float32, -bound, bound)
        params.append((w, b))
    return params


def reference_forward(x, params):
    h = x
    for i, (w, b) in enumerate(params):
        h = h @ w.T + b[:, 0]
        if i < len(params) - 1:
            h = jnp.maximum(h, 0.0)
    return h


if __name__ == "__main__":
    key = jax.random.PRNGKey(0)
    input_size = 32
    batch = 200   # deliberately not tile-aligned -> exercises padding + grid=2

    kx, kp = jax.random.split(key)
    x = jax.random.normal(kx, (batch, input_size), dtype=jnp.float32)
    params = init_params(kp, input_size)

    ref = reference_forward(x, params)

    # Pure-f32 path (tight check).
    out_f32 = jax.block_until_ready(growth_nn_forward(x, params, use_bf16=False))
    assert out_f32.shape == (batch, 1), out_f32.shape
    assert jnp.allclose(out_f32, ref, atol=1e-4, rtol=1e-4), (
        f"f32 max abs err {jnp.max(jnp.abs(out_f32 - ref))}")

    # Default path: bf16 MXU inputs, f32 accumulation (bf16 elementwise tail
    # on v6e/v7x, f32 tail elsewhere).
    out_def = jax.block_until_ready(growth_nn_forward(x, params))
    assert out_def.shape == (batch, 1), out_def.shape
    assert jnp.allclose(out_def, ref, atol=5e-2, rtol=5e-2), (
        f"bf16 max abs err {jnp.max(jnp.abs(out_def - ref))}")

    print("KERNEL_OK")
</pallas_src>

<mosaic_0001>
module attributes {stable_mosaic.version = 11 : i64} {
  func.func @growth_nn_kernel(%arg0: i32, %arg1: memref<128x32xf32, #tpu.memory_space<vmem>>, %arg2: memref<64x32xf32, #tpu.memory_space<vmem>>, %arg3: memref<64x1xf32, #tpu.memory_space<vmem>>, %arg4: memref<128x64xf32, #tpu.memory_space<vmem>>, %arg5: memref<128x1xf32, #tpu.memory_space<vmem>>, %arg6: memref<256x128xf32, #tpu.memory_space<vmem>>, %arg7: memref<256x1xf32, #tpu.memory_space<vmem>>, %arg8: memref<128x256xf32, #tpu.memory_space<vmem>>, %arg9: memref<128x1xf32, #tpu.memory_space<vmem>>, %arg10: memref<64x128xf32, #tpu.memory_space<vmem>>, %arg11: memref<64x1xf32, #tpu.memory_space<vmem>>, %arg12: memref<32x64xf32, #tpu.memory_space<vmem>>, %arg13: memref<32x1xf32, #tpu.memory_space<vmem>>, %arg14: memref<32x1xf32, #tpu.memory_space<vmem>>, %arg15: memref<1x1xf32, #tpu.memory_space<vmem>>, %arg16: memref<1x128xf32, #tpu.memory_space<vmem>>) attributes {dimension_semantics = [#tpu.dimension_semantics<parallel>], iteration_bounds = array<i64: 2>, scalar_prefetch = 0 : i64, scratch_operands = 0 : i64, tpu.core_type = #tpu.core_type<tc>, window_params = [{transform_indices = @transform_0, window_bounds = array<i64: 128, 32>}, {pipeline_mode = #tpu.pipeline_mode<synchronous>, transform_indices = @transform_1, window_bounds = array<i64: 64, 32>}, {pipeline_mode = #tpu.pipeline_mode<synchronous>, transform_indices = @transform_2, window_bounds = array<i64: 64, 1>}, {pipeline_mode = #tpu.pipeline_mode<synchronous>, transform_indices = @transform_3, window_bounds = array<i64: 128, 64>}, {pipeline_mode = #tpu.pipeline_mode<synchronous>, transform_indices = @transform_4, window_bounds = array<i64: 128, 1>}, {pipeline_mode = #tpu.pipeline_mode<synchronous>, transform_indices = @transform_5, window_bounds = array<i64: 256, 128>}, {pipeline_mode = #tpu.pipeline_mode<synchronous>, transform_indices = @transform_6, window_bounds = array<i64: 256, 1>}, {pipeline_mode = #tpu.pipeline_mode<synchronous>, transform_indices = @transform_7, window_bounds = array<i64: 128, 256>}, {pipeline_mode = #tpu.pipeline_mode<synchronous>, transform_indices = @transform_8, window_bounds = array<i64: 128, 1>}, {pipeline_mode = #tpu.pipeline_mode<synchronous>, transform_indices = @transform_9, window_bounds = array<i64: 64, 128>}, {pipeline_mode = #tpu.pipeline_mode<synchronous>, transform_indices = @transform_10, window_bounds = array<i64: 64, 1>}, {pipeline_mode = #tpu.pipeline_mode<synchronous>, transform_indices = @transform_11, window_bounds = array<i64: 32, 64>}, {pipeline_mode = #tpu.pipeline_mode<synchronous>, transform_indices = @transform_12, window_bounds = array<i64: 32, 1>}, {pipeline_mode = #tpu.pipeline_mode<synchronous>, transform_indices = @transform_13, window_bounds = array<i64: 32, 1>}, {pipeline_mode = #tpu.pipeline_mode<synchronous>, transform_indices = @transform_14, window_bounds = array<i64: 1, 1>}, {transform_indices = @transform_15, window_bounds = array<i64: 1, 128>}]} {
    %c0 = arith.constant 0 : index
    %c0_0 = arith.constant 0 : index
    %0 = vector.load %arg1[%c0, %c0_0] : memref<128x32xf32, #tpu.memory_space<vmem>>, vector<128x32xf32>
    %c0_1 = arith.constant 0 : index
    %c0_2 = arith.constant 0 : index
    %1 = vector.load %arg2[%c0_1, %c0_2] : memref<64x32xf32, #tpu.memory_space<vmem>>, vector<64x32xf32>
    %c0_3 = arith.constant 0 : index
    %c0_4 = arith.constant 0 : index
    %2 = vector.load %arg3[%c0_3, %c0_4] : memref<64x1xf32, #tpu.memory_space<vmem>>, vector<64x1xf32>
    %cst = arith.constant dense<0.000000e+00> : vector<64x128xf32>
    %3 = tpu.matmul %1, %0, %cst {dimension_numbers = #tpu.dot_dimension_numbers<[1], [1], [0], [0], [0, 0, 1, 0], [], []>} : vector<64x32xf32>, vector<128x32xf32>, vector<64x128xf32> -> vector<64x128xf32>
    %4 = vector.broadcast %2 : vector<64x1xf32> to vector<64x128xf32>
    %5 = arith.addf %3, %4 : vector<64x128xf32>
    %cst_5 = arith.constant 0.000000e+00 : f32
    %6 = vector.broadcast %cst_5 : f32 to vector<64x128xf32>
    %7 = arith.maximumf %5, %6 : vector<64x128xf32>
    %c0_6 = arith.constant 0 : index
    %c0_7 = arith.constant 0 : index
    %8 = vector.load %arg4[%c0_6, %c0_7] : memref<128x64xf32, #tpu.memory_space<vmem>>, vector<128x64xf32>
    %c0_8 = arith.constant 0 : index
    %c0_9 = arith.constant 0 : index
    %9 = vector.load %arg5[%c0_8, %c0_9] : memref<128x1xf32, #tpu.memory_space<vmem>>, vector<128x1xf32>
    %cst_10 = arith.constant dense<0.000000e+00> : vector<128x128xf32>
    %10 = tpu.matmul %8, %7, %cst_10 {dimension_numbers = #tpu.dot_dimension_numbers<[1], [0], [0], [1], [0, 0, 1, 1], [], []>} : vector<128x64xf32>, vector<64x128xf32>, vector<128x128xf32> -> vector<128x128xf32>
    %11 = vector.broadcast %9 : vector<128x1xf32> to vector<128x128xf32>
    %12 = arith.addf %10, %11 : vector<128x128xf32>
    %cst_11 = arith.constant 0.000000e+00 : f32
    %13 = vector.broadcast %cst_11 : f32 to vector<128x128xf32>
    %14 = arith.maximumf %12, %13 : vector<128x128xf32>
    %c0_12 = arith.constant 0 : index
    %c0_13 = arith.constant 0 : index
    %15 = vector.load %arg6[%c0_12, %c0_13] : memref<256x128xf32, #tpu.memory_space<vmem>>, vector<256x128xf32>
    %c0_14 = arith.constant 0 : index
    %c0_15 = arith.constant 0 : index
    %16 = vector.load %arg7[%c0_14, %c0_15] : memref<256x1xf32, #tpu.memory_space<vmem>>, vector<256x1xf32>
    %cst_16 = arith.constant dense<0.000000e+00> : vector<256x128xf32>
    %17 = tpu.matmul %15, %14, %cst_16 {dimension_numbers = #tpu.dot_dimension_numbers<[1], [0], [0], [1], [0, 0, 1, 1], [], []>} : vector<256x128xf32>, vector<128x128xf32>, vector<256x128xf32> -> vector<256x128xf32>
    %18 = vector.broadcast %16 : vector<256x1xf32> to vector<256x128xf32>
    %19 = arith.addf %17, %18 : vector<256x128xf32>
    %cst_17 = arith.constant 0.000000e+00 : f32
    %20 = vector.broadcast %cst_17 : f32 to vector<256x128xf32>
    %21 = arith.maximumf %19, %20 : vector<256x128xf32>
    %c0_18 = arith.constant 0 : index
    %c0_19 = arith.constant 0 : index
    %22 = vector.load %arg8[%c0_18, %c0_19] : memref<128x256xf32, #tpu.memory_space<vmem>>, vector<128x256xf32>
    %c0_20 = arith.constant 0 : index
    %c0_21 = arith.constant 0 : index
    %23 = vector.load %arg9[%c0_20, %c0_21] : memref<128x1xf32, #tpu.memory_space<vmem>>, vector<128x1xf32>
    %cst_22 = arith.constant dense<0.000000e+00> : vector<128x128xf32>
    %24 = tpu.matmul %22, %21, %cst_22 {dimension_numbers = #tpu.dot_dimension_numbers<[1], [0], [0], [1], [0, 0, 1, 1], [], []>} : vector<128x256xf32>, vector<256x128xf32>, vector<128x128xf32> -> vector<128x128xf32>
    %25 = vector.broadcast %23 : vector<128x1xf32> to vector<128x128xf32>
    %26 = arith.addf %24, %25 : vector<128x128xf32>
    %cst_23 = arith.constant 0.000000e+00 : f32
    %27 = vector.broadcast %cst_23 : f32 to vector<128x128xf32>
    %28 = arith.maximumf %26, %27 : vector<128x128xf32>
    %c0_24 = arith.constant 0 : index
    %c0_25 = arith.constant 0 : index
    %29 = vector.load %arg10[%c0_24, %c0_25] : memref<64x128xf32, #tpu.memory_space<vmem>>, vector<64x128xf32>
    %c0_26 = arith.constant 0 : index
    %c0_27 = arith.constant 0 : index
    %30 = vector.load %arg11[%c0_26, %c0_27] : memref<64x1xf32, #tpu.memory_space<vmem>>, vector<64x1xf32>
    %cst_28 = arith.constant dense<0.000000e+00> : vector<64x128xf32>
    %31 = tpu.matmul %29, %28, %cst_28 {dimension_numbers = #tpu.dot_dimension_numbers<[1], [0], [0], [1], [0, 0, 1, 1], [], []>} : vector<64x128xf32>, vector<128x128xf32>, vector<64x128xf32> -> vector<64x128xf32>
    %32 = vector.broadcast %30 : vector<64x1xf32> to vector<64x128xf32>
    %33 = arith.addf %31, %32 : vector<64x128xf32>
    %cst_29 = arith.constant 0.000000e+00 : f32
    %34 = vector.broadcast %cst_29 : f32 to vector<64x128xf32>
    %35 = arith.maximumf %33, %34 : vector<64x128xf32>
    %c0_30 = arith.constant 0 : index
    %c0_31 = arith.constant 0 : index
    %36 = vector.load %arg12[%c0_30, %c0_31] : memref<32x64xf32, #tpu.memory_space<vmem>>, vector<32x64xf32>
    %c0_32 = arith.constant 0 : index
    %c0_33 = arith.constant 0 : index
    %37 = vector.load %arg13[%c0_32, %c0_33] : memref<32x1xf32, #tpu.memory_space<vmem>>, vector<32x1xf32>
    %cst_34 = arith.constant dense<0.000000e+00> : vector<32x128xf32>
    %38 = tpu.matmul %36, %35, %cst_34 {dimension_numbers = #tpu.dot_dimension_numbers<[1], [0], [0], [1], [0, 0, 1, 1], [], []>} : vector<32x64xf32>, vector<64x128xf32>, vector<32x128xf32> -> vector<32x128xf32>
    %39 = vector.broadcast %37 : vector<32x1xf32> to vector<32x128xf32>
    %40 = arith.addf %38, %39 : vector<32x128xf32>
    %cst_35 = arith.constant 0.000000e+00 : f32
    %41 = vector.broadcast %cst_35 : f32 to vector<32x128xf32>
    %42 = arith.maximumf %40, %41 : vector<32x128xf32>
    %c0_36 = arith.constant 0 : index
    %c0_37 = arith.constant 0 : index
    %43 = vector.load %arg14[%c0_36, %c0_37] : memref<32x1xf32, #tpu.memory_space<vmem>>, vector<32x1xf32>
    %44 = vector.broadcast %43 : vector<32x1xf32> to vector<32x128xf32>
    %45 = arith.mulf %44, %42 : vector<32x128xf32>
    %cst_38 = arith.constant dense<0.000000e+00> : vector<128xf32>
    %46 = vector.multi_reduction <add>, %45, %cst_38 [0] : vector<32x128xf32> to vector<128xf32>
    %47 = vector.shape_cast %46 : vector<128xf32> to vector<1x128xf32>
    %c0_39 = arith.constant 0 : index
    %c0_40 = arith.constant 0 : index
    %48 = vector.load %arg15[%c0_39, %c0_40] : memref<1x1xf32, #tpu.memory_space<vmem>>, vector<1x1xf32>
    %49 = vector.broadcast %48 : vector<1x1xf32> to vector<1x128xf32>
    %50 = arith.addf %47, %49 : vector<1x128xf32>
    %c0_41 = arith.constant 0 : index
    %c0_42 = arith.constant 0 : index
    %51 = vector.load %arg16[%c0_41, %c0_42] : memref<1x128xf32, #tpu.memory_space<vmem>>, vector<1x128xf32>
    tpu.vector_store %arg16[%c0_41, %c0_42], %50 {strides = array<i32>} : memref<1x128xf32, #tpu.memory_space<vmem>>, vector<1x128xf32>,
    return
  }
  func.func @transform_0(%arg0: i32) -> (i32, i32) {
    %c0_i32 = arith.constant 0 : i32
    %c0_i32_0 = arith.constant 0 : i32
    return %arg0, %c0_i32 : i32, i32
  }
  func.func @transform_1(%arg0: i32) -> (i32, i32) {
    %c0_i32 = arith.constant 0 : i32
    %c0_i32_0 = arith.constant 0 : i32
    %c0_i32_1 = arith.constant 0 : i32
    return %c0_i32, %c0_i32_0 : i32, i32
  }
  func.func @transform_2(%arg0: i32) -> (i32, i32) {
    %c0_i32 = arith.constant 0 : i32
    %c0_i32_0 = arith.constant 0 : i32
    %c0_i32_1 = arith.constant 0 : i32
    return %c0_i32, %c0_i32_0 : i32, i32
  }
  func.func @transform_3(%arg0: i32) -> (i32, i32) {
    %c0_i32 = arith.constant 0 : i32
    %c0_i32_0 = arith.constant 0 : i32
    %c0_i32_1 = arith.constant 0 : i32
    return %c0_i32, %c0_i32_0 : i32, i32
  }
  func.func @transform_4(%arg0: i32) -> (i32, i32) {
    %c0_i32 = arith.constant 0 : i32
    %c0_i32_0 = arith.constant 0 : i32
    %c0_i32_1 = arith.constant 0 : i32
    return %c0_i32, %c0_i32_0 : i32, i32
  }
  func.func @transform_5(%arg0: i32) -> (i32, i32) {
    %c0_i32 = arith.constant 0 : i32
    %c0_i32_0 = arith.constant 0 : i32
    %c0_i32_1 = arith.constant 0 : i32
    return %c0_i32, %c0_i32_0 : i32, i32
  }
  func.func @transform_6(%arg0: i32) -> (i32, i32) {
    %c0_i32 = arith.constant 0 : i32
    %c0_i32_0 = arith.constant 0 : i32
    %c0_i32_1 = arith.constant 0 : i32
    return %c0_i32, %c0_i32_0 : i32, i32
  }
  func.func @transform_7(%arg0: i32) -> (i32, i32) {
    %c0_i32 = arith.constant 0 : i32
    %c0_i32_0 = arith.constant 0 : i32
    %c0_i32_1 = arith.constant 0 : i32
    return %c0_i32, %c0_i32_0 : i32, i32
  }
  func.func @transform_8(%arg0: i32) -> (i32, i32) {
    %c0_i32 = arith.constant 0 : i32
    %c0_i32_0 = arith.constant 0 : i32
    %c0_i32_1 = arith.constant 0 : i32
    return %c0_i32, %c0_i32_0 : i32, i32
  }
  func.func @transform_9(%arg0: i32) -> (i32, i32) {
    %c0_i32 = arith.constant 0 : i32
    %c0_i32_0 = arith.constant 0 : i32
    %c0_i32_1 = arith.constant 0 : i32
    return %c0_i32, %c0_i32_0 : i32, i32
  }
  func.func @transform_10(%arg0: i32) -> (i32, i32) {
    %c0_i32 = arith.constant 0 : i32
    %c0_i32_0 = arith.constant 0 : i32
    %c0_i32_1 = arith.constant 0 : i32
    return %c0_i32, %c0_i32_0 : i32, i32
  }
  func.func @transform_11(%arg0: i32) -> (i32, i32) {
    %c0_i32 = arith.constant 0 : i32
    %c0_i32_0 = arith.constant 0 : i32
    %c0_i32_1 = arith.constant 0 : i32
    return %c0_i32, %c0_i32_0 : i32, i32
  }
  func.func @transform_12(%arg0: i32) -> (i32, i32) {
    %c0_i32 = arith.constant 0 : i32
    %c0_i32_0 = arith.constant 0 : i32
    %c0_i32_1 = arith.constant 0 : i32
    return %c0_i32, %c0_i32_0 : i32, i32
  }
  func.func @transform_13(%arg0: i32) -> (i32, i32) {
    %c0_i32 = arith.constant 0 : i32
    %c0_i32_0 = arith.constant 0 : i32
    %c0_i32_1 = arith.constant 0 : i32
    return %c0_i32, %c0_i32_0 : i32, i32
  }
  func.func @transform_14(%arg0: i32) -> (i32, i32) {
    %c0_i32 = arith.constant 0 : i32
    %c0_i32_0 = arith.constant 0 : i32
    %c0_i32_1 = arith.constant 0 : i32
    return %c0_i32, %c0_i32_0 : i32, i32
  }
  func.func @transform_15(%arg0: i32) -> (i32, i32) {
    %c0_i32 = arith.constant 0 : i32
    %c0_i32_0 = arith.constant 0 : i32
    return %c0_i32, %arg0 : i32, i32
  }
}

</mosaic_0001>

<llo_original>
// kernel: tpu_custom_call.1
$region0: #{tpu_custom_call.1}
  #allocation0 [shape = 'u32[]', space=smem, size = 0x4, offset = 0x4, fixed_abs, tag = 'smem constant byte address 0x4 - core index']
  #allocation1 [shape = 'u32[72,128]{1,0:T(1,128)}', space=vmem, size = 0x9000, scoped, tag = 'internal scratch']
  #allocation2 [shape = 'f32[1,1]{1,0:T(1,128)S(1)}', space=vmem, size = 0x200, scoped, tag = 'scoped memory for tpu_custom_call.1']
  %s0 = inlined_call_operand.vmem [shape: f32[256,32], index: 0, kind: input, shape index: {}]
  %s1 = inlined_call_operand.vmem [shape: f32[64,32], index: 1, kind: input, shape index: {}]
  %s2 = inlined_call_operand.vmem [shape: f32[64,1], index: 2, kind: input, shape index: {}]
  %s3 = inlined_call_operand.vmem [shape: f32[128,64], index: 3, kind: input, shape index: {}]
  %s4 = inlined_call_operand.vmem [shape: f32[128,1], index: 4, kind: input, shape index: {}]
  %s5 = inlined_call_operand.vmem [shape: f32[256,128], index: 5, kind: input, shape index: {}]
  %s6 = inlined_call_operand.vmem [shape: f32[256,1], index: 6, kind: input, shape index: {}]
  %s7 = inlined_call_operand.vmem [shape: f32[128,256], index: 7, kind: input, shape index: {}]
  %s8 = inlined_call_operand.vmem [shape: f32[128,1], index: 8, kind: input, shape index: {}]
  %s9 = inlined_call_operand.vmem [shape: f32[64,128], index: 9, kind: input, shape index: {}]
  %s10 = inlined_call_operand.vmem [shape: f32[64,1], index: 10, kind: input, shape index: {}]
  %s11 = inlined_call_operand.vmem [shape: f32[32,64], index: 11, kind: input, shape index: {}]
  %s12 = inlined_call_operand.vmem [shape: f32[32,1], index: 12, kind: input, shape index: {}]
  %s13 = inlined_call_operand.vmem [shape: f32[32,1], index: 13, kind: input, shape index: {}]
  %s14 = inlined_call_operand.<no memory space> [shape: f32[1,1], index: 14, kind: input, shape index: {}]
  %s15 = inlined_call_operand.hbm [shape: f32[1,256], index: 15, kind: output, shape index: {}]
  %s16 = sld [smem:[#allocation0]]
  $region93: #{tpu_custom_call.1} parent=0
    _
  %s18 = ssub.s32 1, %s16
  %s19 = scalar_select 0, %s18, %s16
  %v20 = vstv %s14
  %21 = vst [vmem:[#allocation2] sm:$0x1] %v20
  $region1: #{tpu_custom_call.1} parent=0
    #allocation3 [shape = 'u8[1024]{0}', space=vmem, size = 0x400, scoped, tag = 'output window, operand 0']
    #allocation4 [shape = 's32[2]{0}', space=sflag, size = 0x8, scoped, tag = 'scoped memory for tpu_custom_call.1']
    %22 = vsyncpa [#allocation4], 0
    %s23 = scalar_lea.sflag [#allocation4], 1
    %24 = vsyncpa %s23, 0
    loop: start=0, step=1, limit=4
    $region2: #{tpu_custom_call.1} parent=1 // loop_pre_header
      _
    $region3: #{tpu_custom_call.1} parent=1 // loop_header
      %s26 = sphi 0, %s30
      %p27 = scmp.ge.s32.totalorder %s26, 4
      %s36 = sphi 0, %s38
      %s39 = sphi 0, %s36
      %s40 = sphi 0, %s39
      %s56 = sphi 0, %s40
      %s60 = sphi 0, %s60
      %s62 = sphi 0, %s60
      %s63 = sphi 0, %s62
      %s77 = sphi 0, %s63
      %s81 = sphi 0, %s81
      %s83 = sphi 0, %s81
      %s84 = sphi 0, %s83
      %s98 = sphi 0, %s84
      %s102 = sphi 0, %s102
      %s104 = sphi 0, %s102
      %s105 = sphi 0, %s104
      %s119 = sphi 0, %s105
      %s123 = sphi 0, %s123
      %s125 = sphi 0, %s123
      %s126 = sphi 0, %s125
      %s140 = sphi 0, %s126
      %s144 = sphi 0, %s144
      %s146 = sphi 0, %s144
      %s147 = sphi 0, %s146
      %s161 = sphi 0, %s147
      %s165 = sphi 0, %s165
      %s167 = sphi 0, %s165
      %s168 = sphi 0, %s167
      %s182 = sphi 0, %s168
      %s186 = sphi 0, %s186
      %s188 = sphi 0, %s186
      %s189 = sphi 0, %s188
      %s203 = sphi 0, %s189
      %s207 = sphi 0, %s207
      %s209 = sphi 0, %s207
      %s210 = sphi 0, %s209
      %s224 = sphi 0, %s210
      %s228 = sphi 0, %s228
      %s230 = sphi 0, %s228
      %s231 = sphi 0, %s230
      %s245 = sphi 0, %s231
      %s249 = sphi 0, %s249
      %s251 = sphi 0, %s249
      %s252 = sphi 0, %s251
      %s266 = sphi 0, %s252
      %s270 = sphi 0, %s270
      %s272 = sphi 0, %s270
      %s273 = sphi 0, %s272
      %s287 = sphi 0, %s273
      %s291 = sphi 0, %s291
      %s293 = sphi 0, %s291
      %s294 = sphi 0, %s293
      %s308 = sphi 0, %s294
      %s312 = sphi 0, %s312
      %s314 = sphi 0, %s312
      %s315 = sphi 0, %s314
      %s329 = sphi 0, %s315
      %s333 = sphi 0, %s333
      %s335 = sphi 0, %s333
      %s336 = sphi 0, %s335
      %s350 = sphi 0, %s336
      %s356 = sphi 0, %s358
      %s359 = sphi 0, %s356
      %s360 = sphi 0, %s359
      %s376 = sphi 0, %s360
    $region4: #{tpu_custom_call.1} parent=1 // loop_header_branch
      %29 = sbr.rel (%p27) target = $region8
    $region5: #{tpu_custom_call.1} parent=1 // loop_body
      %s31 = ssub.s32 %s26, 1
      %s32 = ssub.s32 %s26, 2
      %s33 = sadd.s32 %s26, 1
      %s34 = ssub.s32 %s26, %s33
      %p35 = scmp.eq.s32.totalorder %s34, 0
      %s37 = sadd.s32 %s36, 1
      %s38 = scalar_select %p35, %s36, %s37
      %p41 = pneg %p35
      %p42 = scmp.eq.s32.totalorder %s26, 1
      %p43 = por %p41, %p42
      %p44 = scmp.ne.s32.totalorder %s36, %s39
      %p45 = scmp.eq.s32.totalorder %s26, 0
      %p46 = por %p44, %p45
      %p47 = scmp.ne.s32.totalorder %s36, %s39
      %p48 = scmp.eq.s32.totalorder %s31, 1
      %p49 = por %p47, %p48
      %p50 = scmp.ne.s32.totalorder %s39, %s40
      %p51 = scmp.eq.s32.totalorder %s31, 0
      %p52 = por %p50, %p51
      %p53 = scmp.ne.s32.totalorder %s39, %s40
      %p54 = scmp.eq.s32.totalorder %s32, 1
      %p55 = por %p53, %p54
      %p57 = scmp.ne.s32.totalorder %s40, %s56
      %p58 = scmp.eq.s32.totalorder %s32, 0
      %p59 = por %p57, %p58
      %s61 = sadd.s32 %s60, 1
      %p64 = scmp.eq.s32.totalorder %s26, 1
      %p65 = scmp.ne.s32.totalorder %s60, %s62
      %p66 = scmp.eq.s32.totalorder %s26, 0
      %p67 = por %p65, %p66
      %p68 = scmp.ne.s32.totalorder %s60, %s62
      %p69 = scmp.eq.s32.totalorder %s31, 1
      %p70 = por %p68, %p69
      %p71 = scmp.ne.s32.totalorder %s62, %s63
      %p72 = scmp.eq.s32.totalorder %s31, 0
      %p73 = por %p71, %p72
      %p74 = scmp.ne.s32.totalorder %s62, %s63
      %p75 = scmp.eq.s32.totalorder %s32, 1
      %p76 = por %p74, %p75
      %p78 = scmp.ne.s32.totalorder %s63, %s77
      %p79 = scmp.eq.s32.totalorder %s32, 0
      %p80 = por %p78, %p79
      %s82 = sadd.s32 %s81, 1
      %p85 = scmp.eq.s32.totalorder %s26, 1
      %p86 = scmp.ne.s32.totalorder %s81, %s83
      %p87 = scmp.eq.s32.totalorder %s26, 0
      %p88 = por %p86, %p87
      %p89 = scmp.ne.s32.totalorder %s81, %s83
      %p90 = scmp.eq.s32.totalorder %s31, 1
      %p91 = por %p89, %p90
      %p92 = scmp.ne.s32.totalorder %s83, %s84
      %p93 = scmp.eq.s32.totalorder %s31, 0
      %p94 = por %p92, %p93
      %p95 = scmp.ne.s32.totalorder %s83, %s84
      %p96 = scmp.eq.s32.totalorder %s32, 1
      %p97 = por %p95, %p96
      %p99 = scmp.ne.s32.totalorder %s84, %s98
      %p100 = scmp.eq.s32.totalorder %s32, 0
      %p101 = por %p99, %p100
      %s103 = sadd.s32 %s102, 1
      %p106 = scmp.eq.s32.totalorder %s26, 1
      %p107 = scmp.ne.s32.totalorder %s102, %s104
      %p108 = scmp.eq.s32.totalorder %s26, 0
      %p109 = por %p107, %p108
      %p110 = scmp.ne.s32.totalorder %s102, %s104
      %p111 = scmp.eq.s32.totalorder %s31, 1
      %p112 = por %p110, %p111
      %p113 = scmp.ne.s32.totalorder %s104, %s105
      %p114 = scmp.eq.s32.totalorder %s31, 0
      %p115 = por %p113, %p114
      %p116 = scmp.ne.s32.totalorder %s104, %s105
      %p117 = scmp.eq.s32.totalorder %s32, 1
      %p118 = por %p116, %p117
      %p120 = scmp.ne.s32.totalorder %s105, %s119
      %p121 = scmp.eq.s32.totalorder %s32, 0
      %p122 = por %p120, %p121
      %s124 = sadd.s32 %s123, 1
      %p127 = scmp.eq.s32.totalorder %s26, 1
      %p128 = scmp.ne.s32.totalorder %s123, %s125
      %p129 = scmp.eq.s32.totalorder %s26, 0
      %p130 = por %p128, %p129
      %p131 = scmp.ne.s32.totalorder %s123, %s125
      %p132 = scmp.eq.s32.totalorder %s31, 1
      %p133 = por %p131, %p132
      %p134 = scmp.ne.s32.totalorder %s125, %s126
      %p135 = scmp.eq.s32.totalorder %s31, 0
      %p136 = por %p134, %p135
      %p137 = scmp.ne.s32.totalorder %s125, %s126
      %p138 = scmp.eq.s32.totalorder %s32, 1
      %p139 = por %p137, %p138
      %p141 = scmp.ne.s32.totalorder %s126, %s140
      %p142 = scmp.eq.s32.totalorder %s32, 0
      %p143 = por %p141, %p142
      %s145 = sadd.s32 %s144, 1
      %p148 = scmp.eq.s32.totalorder %s26, 1
      %p149 = scmp.ne.s32.totalorder %s144, %s146
      %p150 = scmp.eq.s32.totalorder %s26, 0
      %p151 = por %p149, %p150
      %p152 = scmp.ne.s32.totalorder %s144, %s146
      %p153 = scmp.eq.s32.totalorder %s31, 1
      %p154 = por %p152, %p153
      %p155 = scmp.ne.s32.totalorder %s146, %s147
      %p156 = scmp.eq.s32.totalorder %s31, 0
      %p157 = por %p155, %p156
      %p158 = scmp.ne.s32.totalorder %s146, %s147
      %p159 = scmp.eq.s32.totalorder %s32, 1
      %p160 = por %p158, %p159
      %p162 = scmp.ne.s32.totalorder %s147, %s161
      %p163 = scmp.eq.s32.totalorder %s32, 0
      %p164 = por %p162, %p163
      %s166 = sadd.s32 %s165, 1
      %p169 = scmp.eq.s32.totalorder %s26, 1
      %p170 = scmp.ne.s32.totalorder %s165, %s167
      %p171 = scmp.eq.s32.totalorder %s26, 0
      %p172 = por %p170, %p171
      %p173 = scmp.ne.s32.totalorder %s165, %s167
      %p174 = scmp.eq.s32.totalorder %s31, 1
      %p175 = por %p173, %p174
      %p176 = scmp.ne.s32.totalorder %s167, %s168
      %p177 = scmp.eq.s32.totalorder %s31, 0
      %p178 = por %p176, %p177
      %p179 = scmp.ne.s32.totalorder %s167, %s168
      %p180 = scmp.eq.s32.totalorder %s32, 1
      %p181 = por %p179, %p180
      %p183 = scmp.ne.s32.totalorder %s168, %s182
      %p184 = scmp.eq.s32.totalorder %s32, 0
      %p185 = por %p183, %p184
      %s187 = sadd.s32 %s186, 1
      %p190 = scmp.eq.s32.totalorder %s26, 1
      %p191 = scmp.ne.s32.totalorder %s186, %s188
      %p192 = scmp.eq.s32.totalorder %s26, 0
      %p193 = por %p191, %p192
      %p194 = scmp.ne.s32.totalorder %s186, %s188
      %p195 = scmp.eq.s32.totalorder %s31, 1
      %p196 = por %p194, %p195
      %p197 = scmp.ne.s32.totalorder %s188, %s189
      %p198 = scmp.eq.s32.totalorder %s31, 0
      %p199 = por %p197, %p198
      %p200 = scmp.ne.s32.totalorder %s188, %s189
      %p201 = scmp.eq.s32.totalorder %s32, 1
      %p202 = por %p200, %p201
      %p204 = scmp.ne.s32.totalorder %s189, %s203
      %p205 = scmp.eq.s32.totalorder %s32, 0
      %p206 = por %p204, %p205
      %s208 = sadd.s32 %s207, 1
      %p211 = scmp.eq.s32.totalorder %s26, 1
      %p212 = scmp.ne.s32.totalorder %s207, %s209
      %p213 = scmp.eq.s32.totalorder %s26, 0
      %p214 = por %p212, %p213
      %p215 = scmp.ne.s32.totalorder %s207, %s209
      %p216 = scmp.eq.s32.totalorder %s31, 1
      %p217 = por %p215, %p216
      %p218 = scmp.ne.s32.totalorder %s209, %s210
      %p219 = scmp.eq.s32.totalorder %s31, 0
      %p220 = por %p218, %p219
      %p221 = scmp.ne.s32.totalorder %s209, %s210
      %p222 = scmp.eq.s32.totalorder %s32, 1
      %p223 = por %p221, %p222
      %p225 = scmp.ne.s32.totalorder %s210, %s224
      %p226 = scmp.eq.s32.totalorder %s32, 0
      %p227 = por %p225, %p226
      %s229 = sadd.s32 %s228, 1
      %p232 = scmp.eq.s32.totalorder %s26, 1
      %p233 = scmp.ne.s32.totalorder %s228, %s230
      %p234 = scmp.eq.s32.totalorder %s26, 0
      %p235 = por %p233, %p234
      %p236 = scmp.ne.s32.totalorder %s228, %s230
      %p237 = scmp.eq.s32.totalorder %s31, 1
      %p238 = por %p236, %p237
      %p239 = scmp.ne.s32.totalorder %s230, %s231
      %p240 = scmp.eq.s32.totalorder %s31, 0
      %p241 = por %p239, %p240
      %p242 = scmp.ne.s32.totalorder %s230, %s231
      %p243 = scmp.eq.s32.totalorder %s32, 1
      %p244 = por %p242, %p243
      %p246 = scmp.ne.s32.totalorder %s231, %s245
      %p247 = scmp.eq.s32.totalorder %s32, 0
      %p248 = por %p246, %p247
      %s250 = sadd.s32 %s249, 1
      %p253 = scmp.eq.s32.totalorder %s26, 1
      %p254 = scmp.ne.s32.totalorder %s249, %s251
      %p255 = scmp.eq.s32.totalorder %s26, 0
      %p256 = por %p254, %p255
      %p257 = scmp.ne.s32.totalorder %s249, %s251
      %p258 = scmp.eq.s32.totalorder %s31, 1
      %p259 = por %p257, %p258
      %p260 = scmp.ne.s32.totalorder %s251, %s252
      %p261 = scmp.eq.s32.totalorder %s31, 0
      %p262 = por %p260, %p261
      %p263 = scmp.ne.s32.totalorder %s251, %s252
      %p264 = scmp.eq.s32.totalorder %s32, 1
      %p265 = por %p263, %p264
      %p267 = scmp.ne.s32.totalorder %s252, %s266
      %p268 = scmp.eq.s32.totalorder %s32, 0
      %p269 = por %p267, %p268
      %s271 = sadd.s32 %s270, 1
      %p274 = scmp.eq.s32.totalorder %s26, 1
      %p275 = scmp.ne.s32.totalorder %s270, %s272
      %p276 = scmp.eq.s32.totalorder %s26, 0
      %p277 = por %p275, %p276
      %p278 = scmp.ne.s32.totalorder %s270, %s272
      %p279 = scmp.eq.s32.totalorder %s31, 1
      %p280 = por %p278, %p279
      %p281 = scmp.ne.s32.totalorder %s272, %s273
      %p282 = scmp.eq.s32.totalorder %s31, 0
      %p283 = por %p281, %p282
      %p284 = scmp.ne.s32.totalorder %s272, %s273
      %p285 = scmp.eq.s32.totalorder %s32, 1
      %p286 = por %p284, %p285
      %p288 = scmp.ne.s32.totalorder %s273, %s287
      %p289 = scmp.eq.s32.totalorder %s32, 0
      %p290 = por %p288, %p289
      %s292 = sadd.s32 %s291, 1
      %p295 = scmp.eq.s32.totalorder %s26, 1
      %p296 = scmp.ne.s32.totalorder %s291, %s293
      %p297 = scmp.eq.s32.totalorder %s26, 0
      %p298 = por %p296, %p297
      %p299 = scmp.ne.s32.totalorder %s291, %s293
      %p300 = scmp.eq.s32.totalorder %s31, 1
      %p301 = por %p299, %p300
      %p302 = scmp.ne.s32.totalorder %s293, %s294
      %p303 = scmp.eq.s32.totalorder %s31, 0
      %p304 = por %p302, %p303
      %p305 = scmp.ne.s32.totalorder %s293, %s294
      %p306 = scmp.eq.s32.totalorder %s32, 1
      %p307 = por %p305, %p306
      %p309 = scmp.ne.s32.totalorder %s294, %s308
      %p310 = scmp.eq.s32.totalorder %s32, 0
      %p311 = por %p309, %p310
      %s313 = sadd.s32 %s312, 1
      %p316 = scmp.eq.s32.totalorder %s26, 1
      %p317 = scmp.ne.s32.totalorder %s312, %s314
      %p318 = scmp.eq.s32.totalorder %s26, 0
      %p319 = por %p317, %p318
      %p320 = scmp.ne.s32.totalorder %s312, %s314
      %p321 = scmp.eq.s32.totalorder %s31, 1
      %p322 = por %p320, %p321
      %p323 = scmp.ne.s32.totalorder %s314, %s315
      %p324 = scmp.eq.s32.totalorder %s31, 0
      %p325 = por %p323, %p324
      %p326 = scmp.ne.s32.totalorder %s314, %s315
      %p327 = scmp.eq.s32.totalorder %s32, 1
      %p328 = por %p326, %p327
      %p330 = scmp.ne.s32.totalorder %s315, %s329
      %p331 = scmp.eq.s32.totalorder %s32, 0
      %p332 = por %p330, %p331
      %s334 = sadd.s32 %s333, 1
      %p337 = scmp.eq.s32.totalorder %s26, 1
      %p338 = scmp.ne.s32.totalorder %s333, %s335
      %p339 = scmp.eq.s32.totalorder %s26, 0
      %p340 = por %p338, %p339
      %p341 = scmp.ne.s32.totalorder %s333, %s335
      %p342 = scmp.eq.s32.totalorder %s31, 1
      %p343 = por %p341, %p342
      %p344 = scmp.ne.s32.totalorder %s335, %s336
      %p345 = scmp.eq.s32.totalorder %s31, 0
      %p346 = por %p344, %p345
      %p347 = scmp.ne.s32.totalorder %s335, %s336
      %p348 = scmp.eq.s32.totalorder %s32, 1
      %p349 = por %p347, %p348
      %p351 = scmp.ne.s32.totalorder %s336, %s350
      %p352 = scmp.eq.s32.totalorder %s32, 0
      %p353 = por %p351, %p352
      %s354 = ssub.s32 %s26, %s33
      %p355 = scmp.eq.s32.totalorder %s354, 0
      %s357 = sadd.s32 %s356, 1
      %s358 = scalar_select %p355, %s356, %s357
      %p361 = pneg %p355
      %p362 = scmp.eq.s32.totalorder %s26, 1
      %p363 = por %p361, %p362
      %p364 = scmp.ne.s32.totalorder %s356, %s359
      %p365 = scmp.eq.s32.totalorder %s26, 0
      %p366 = por %p364, %p365
      %p367 = scmp.ne.s32.totalorder %s356, %s359
      %p368 = scmp.eq.s32.totalorder %s31, 1
      %p369 = por %p367, %p368
      %p370 = scmp.ne.s32.totalorder %s359, %s360
      %p371 = scmp.eq.s32.totalorder %s31, 0
      %p372 = por %p370, %p371
      %p373 = scmp.ne.s32.totalorder %s359, %s360
      %p374 = scmp.eq.s32.totalorder %s32, 1
      %p375 = por %p373, %p374
      %p377 = scmp.ne.s32.totalorder %s360, %s376
      %p378 = scmp.eq.s32.totalorder %s32, 0
      %p379 = por %p377, %p378
      %p380 = scmp.le.s32.totalorder 1, %s26
      %p381 = scmp.lt.s32.totalorder %s26, 3
      %p382 = pnand %p380, %p381
      %p383 = pneg %p382
      // Predicated region
      $region9: #{tpu_custom_call.1} parent=5 // pred_check
        _
      $region10: #{tpu_custom_call.1} parent=5 // pred_check_branch
        %385 = sbr.rel (%p382) target = $region12
      $region11: #{tpu_custom_call.1} parent=5 // pred_region
        %s386 = ssub.s32 %s26, 1
        // Predicated region
        $region13: #{tpu_custom_call.1} parent=11 // pred_check
          %p387 = pneg %p73
        $region14: #{tpu_custom_call.1} parent=11 // pred_check_branch
          %389 = sbr.rel (%p387) target = $region16
        $region15: #{tpu_custom_call.1} parent=11 // pred_region
          _
        $region16: #{tpu_custom_call.1} parent=11 // pred_fallthru
          _
        // Predicated region
        $region17: #{tpu_custom_call.1} parent=11 // pred_check
          %p390 = pneg %p94
        $region18: #{tpu_custom_call.1} parent=11 // pred_check_branch
          %392 = sbr.rel (%p390) target = $region20
        $region19: #{tpu_custom_call.1} parent=11 // pred_region
          _
        $region20: #{tpu_custom_call.1} parent=11 // pred_fallthru
          _
        // Predicated region
        $region21: #{tpu_custom_call.1} parent=11 // pred_check
          %p393 = pneg %p115
        $region22: #{tpu_custom_call.1} parent=11 // pred_check_branch
          %395 = sbr.rel (%p393) target = $region24
        $region23: #{tpu_custom_call.1} parent=11 // pred_region
          _
        $region24: #{tpu_custom_call.1} parent=11 // pred_fallthru
          _
        // Predicated region
        $region25: #{tpu_custom_call.1} parent=11 // pred_check
          %p396 = pneg %p136
        $region26: #{tpu_custom_call.1} parent=11 // pred_check_branch
          %398 = sbr.rel (%p396) target = $region28
        $region27: #{tpu_custom_call.1} parent=11 // pred_region
          _
        $region28: #{tpu_custom_call.1} parent=11 // pred_fallthru
          _
        // Predicated region
        $region29: #{tpu_custom_call.1} parent=11 // pred_check
          %p399 = pneg %p157
        $region30: #{tpu_custom_call.1} parent=11 // pred_check_branch
          %401 = sbr.rel (%p399) target = $region32
        $region31: #{tpu_custom_call.1} parent=11 // pred_region
          _
        $region32: #{tpu_custom_call.1} parent=11 // pred_fallthru
          _
        // Predicated region
        $region33: #{tpu_custom_call.1} parent=11 // pred_check
          %p402 = pneg %p178
        $region34: #{tpu_custom_call.1} parent=11 // pred_check_branch
          %404 = sbr.rel (%p402) target = $region36
        $region35: #{tpu_custom_call.1} parent=11 // pred_region
          _
        $region36: #{tpu_custom_call.1} parent=11 // pred_fallthru
          _
        // Predicated region
        $region37: #{tpu_custom_call.1} parent=11 // pred_check
          %p405 = pneg %p199
        $region38: #{tpu_custom_call.1} parent=11 // pred_check_branch
          %407 = sbr.rel (%p405) target = $region40
        $region39: #{tpu_custom_call.1} parent=11 // pred_region
          _
        $region40: #{tpu_custom_call.1} parent=11 // pred_fallthru
          _
        // Predicated region
        $region41: #{tpu_custom_call.1} parent=11 // pred_check
          %p408 = pneg %p220
        $region42: #{tpu_custom_call.1} parent=11 // pred_check_branch
          %410 = sbr.rel (%p408) target = $region44
        $region43: #{tpu_custom_call.1} parent=11 // pred_region
          _
        $region44: #{tpu_custom_call.1} parent=11 // pred_fallthru
          _
        // Predicated region
        $region45: #{tpu_custom_call.1} parent=11 // pred_check
          %p411 = pneg %p241
        $region46: #{tpu_custom_call.1} parent=11 // pred_check_branch
          %413 = sbr.rel (%p411) target = $region48
        $region47: #{tpu_custom_call.1} parent=11 // pred_region
          _
        $region48: #{tpu_custom_call.1} parent=11 // pred_fallthru
          _
        // Predicated region
        $region49: #{tpu_custom_call.1} parent=11 // pred_check
          %p414 = pneg %p262
        $region50: #{tpu_custom_call.1} parent=11 // pred_check_branch
          %416 = sbr.rel (%p414) target = $region52
        $region51: #{tpu_custom_call.1} parent=11 // pred_region
          _
        $region52: #{tpu_custom_call.1} parent=11 // pred_fallthru
          _
        // Predicated region
        $region53: #{tpu_custom_call.1} parent=11 // pred_check
          %p417 = pneg %p283
        $region54: #{tpu_custom_call.1} parent=11 // pred_check_branch
          %419 = sbr.rel (%p417) target = $region56
        $region55: #{tpu_custom_call.1} parent=11 // pred_region
          _
        $region56: #{tpu_custom_call.1} parent=11 // pred_fallthru
          _
        // Predicated region
        $region57: #{tpu_custom_call.1} parent=11 // pred_check
          %p420 = pneg %p304
        $region58: #{tpu_custom_call.1} parent=11 // pred_check_branch
          %422 = sbr.rel (%p420) target = $region60
        $region59: #{tpu_custom_call.1} parent=11 // pred_region
          _
        $region60: #{tpu_custom_call.1} parent=11 // pred_fallthru
          _
        // Predicated region
        $region61: #{tpu_custom_call.1} parent=11 // pred_check
          %p423 = pneg %p325
        $region62: #{tpu_custom_call.1} parent=11 // pred_check_branch
          %425 = sbr.rel (%p423) target = $region64
        $region63: #{tpu_custom_call.1} parent=11 // pred_region
          _
        $region64: #{tpu_custom_call.1} parent=11 // pred_fallthru
          _
        // Predicated region
        $region65: #{tpu_custom_call.1} parent=11 // pred_check
          %p426 = pneg %p346
        $region66: #{tpu_custom_call.1} parent=11 // pred_check_branch
          %428 = sbr.rel (%p426) target = $region68
        $region67: #{tpu_custom_call.1} parent=11 // pred_region
          _
        $region68: #{tpu_custom_call.1} parent=11 // pred_fallthru
          _
      $region12: #{tpu_custom_call.1} parent=5 // pred_fallthru
        _
      %p429 = scmp.lt.s32.totalorder %s26, 2
      // Predicated region
      $region69: #{tpu_custom_call.1} parent=5 // pred_check
        %p430 = pneg %p429
      $region70: #{tpu_custom_call.1} parent=5 // pred_check_branch
        %432 = sbr.rel (%p430) target = $region72
      $region71: #{tpu_custom_call.1} parent=5 // pred_region
        // Predicated region
        $region73: #{tpu_custom_call.1} parent=71 // pred_check
          %p433 = pneg %p46
        $region74: #{tpu_custom_call.1} parent=71 // pred_check_branch
          %435 = sbr.rel (%p433) target = $region76
        $region75: #{tpu_custom_call.1} parent=71 // pred_region
          %s436 = smul.u32 16, %s26
          %p437 = scmp.lt.s32.totalorder %s436, 31
          %s438 = scalar_select %p437, %s436, 31
          %s439 = smul.addr %s438, 8
          %s440 = scalar_lea.vmem %s0, %s439
          %s441 = smul.u32 16, %s26
        $region76: #{tpu_custom_call.1} parent=71 // pred_fallthru
          _
      $region72: #{tpu_custom_call.1} parent=5 // pred_fallthru
        _
      %p442 = scmp.le.s32.totalorder 1, %s26
      %p443 = scmp.lt.s32.totalorder %s26, 3
      %p444 = pnand %p442, %p443
      %p445 = pneg %p444
      // Predicated region
      $region77: #{tpu_custom_call.1} parent=5 // pred_check
        _
      $region78: #{tpu_custom_call.1} parent=5 // pred_check_branch
        %447 = sbr.rel (%p444) target = $region80
      $region79: #{tpu_custom_call.1} parent=5 // pred_region
        %s448 = ssub.s32 %s26, 1
        %s449 = smul.u32 16, %s31
        %p450 = scmp.lt.s32.totalorder %s449, 31
        %s451 = scalar_select %p450, %s449, 31
        %s452 = smul.addr %s451, 8
        %s453 = scalar_lea.vmem %s0, %s452
        %p454 = pneg %p52
        %p455 = pneg %p49
        %p456 = pneg %p73
        %p457 = pneg %p70
        %p458 = pneg %p94
        %p459 = pneg %p91
        %p460 = pneg %p115
        %p461 = pneg %p112
        %p462 = pneg %p136
        %p463 = pneg %p133
        %p464 = pneg %p157
        %p465 = pneg %p154
        %p466 = pneg %p178
        %p467 = pneg %p175
        %p468 = pneg %p199
        %p469 = pneg %p196
        %p470 = pneg %p220
        %p471 = pneg %p217
        %p472 = pneg %p241
        %p473 = pneg %p238
        %p474 = pneg %p262
        %p475 = pneg %p259
        %p476 = pneg %p283
        %p477 = pneg %p280
        %p478 = pneg %p304
        %p479 = pneg %p301
        %p480 = pneg %p325
        %p481 = pneg %p322
        %p482 = pneg %p346
        %p483 = pneg %p343
        %p484 = pneg %p372
        %p485 = pneg %p369
        %s486 = sand.u32 %s359, 1
        %s487 = scalar_lea.sflag [#allocation4], %s486
        %s488 = sand.u32 %s359, 1
        %s489 = scalar_lea.vmem [#allocation3], %s488
        %s490 = smul.u32 16, %s31
        %p491 = scmp.lt.s32.totalorder %s490, 31
        %s492 = scalar_select %p491, %s490, 31
        %s493 = smul.addr %s492, 8
        %s494 = scalar_lea.vmem %s0, %s493
        %s495 = smul.u32 16, %s31
        %v496 = vld [vmem:[%s494] sm:$0xff]
        %v497 = vld [vmem:[%s494 + $0x8] sm:$0xff]
        %v498 = vld [vmem:[%s494 + $0x10] sm:$0xff]
        %v499 = vld [vmem:[%s494 + $0x18] sm:$0xff]
        %v500 = vld [vmem:[%s494 + $0x20] sm:$0xff]
        %v501 = vld [vmem:[%s494 + $0x28] sm:$0xff]
        %v502 = vld [vmem:[%s494 + $0x30] sm:$0xff]
        %v503 = vld [vmem:[%s494 + $0x38] sm:$0xff]
        %v504 = vld [vmem:[%s494 + $0x40] sm:$0xff]
        %v505 = vld [vmem:[%s494 + $0x48] sm:$0xff]
        %v506 = vld [vmem:[%s494 + $0x50] sm:$0xff]
        %v507 = vld [vmem:[%s494 + $0x58] sm:$0xff]
        %v508 = vld [vmem:[%s494 + $0x60] sm:$0xff]
        %v509 = vld [vmem:[%s494 + $0x68] sm:$0xff]
        %v510 = vld [vmem:[%s494 + $0x70] sm:$0xff]
        %v511 = vld [vmem:[%s494 + $0x78] sm:$0xff]
        %v512 = vld [vmem:[%s1] sm:$0xff]
        %v513 = vld [vmem:[%s1 + $0x8] sm:$0xff]
        %v514 = vld [vmem:[%s1 + $0x10] sm:$0xff]
        %v515 = vld [vmem:[%s1 + $0x18] sm:$0xff]
        %v516 = vld [vmem:[%s1 + $0x20] sm:$0xff]
        %v517 = vld [vmem:[%s1 + $0x28] sm:$0xff]
        %v518 = vld [vmem:[%s1 + $0x30] sm:$0xff]
        %v519 = vld [vmem:[%s1 + $0x38] sm:$0xff]
        %v520 = vld [vmem:[%s2] sm:$0xff]
        %v521 = vld [vmem:[%s2 + $0x8] sm:$0xff]
        %v522 = vld [vmem:[%s2 + $0x10] sm:$0xff]
        %v523 = vld [vmem:[%s2 + $0x18] sm:$0xff]
        %v524 = vld [vmem:[%s2 + $0x20] sm:$0xff]
        %v525 = vld [vmem:[%s2 + $0x28] sm:$0xff]
        %v526 = vld [vmem:[%s2 + $0x30] sm:$0xff]
        %v527 = vld [vmem:[%s2 + $0x38] sm:$0xff]
        %529 = vset.pattern.permute.xlu0 0
        %530 = vperm.xlu0 %529, %v520
        %v531 = vpop.permute.xlu0 %530
        %534 = vset.pattern.permute.xlu0 0
        %535 = vperm.xlu0 %534, %v521
        %v536 = vpop.permute.xlu0 %535
        %539 = vset.pattern.permute.xlu0 0
        %540 = vperm.xlu0 %539, %v522
        %v541 = vpop.permute.xlu0 %540
        %544 = vset.pattern.permute.xlu0 0
        %545 = vperm.xlu0 %544, %v523
        %v546 = vpop.permute.xlu0 %545
        %549 = vset.pattern.permute.xlu0 0
        %550 = vperm.xlu0 %549, %v524
        %v551 = vpop.permute.xlu0 %550
        %554 = vset.pattern.permute.xlu0 0
        %555 = vperm.xlu0 %554, %v525
        %v556 = vpop.permute.xlu0 %555
        %559 = vset.pattern.permute.xlu0 0
        %560 = vperm.xlu0 %559, %v526
        %v561 = vpop.permute.xlu0 %560
        %564 = vset.pattern.permute.xlu0 0
        %565 = vperm.xlu0 %564, %v527
        %v566 = vpop.permute.xlu0 %565
        %vm568 = vcmask 261120
        %v570 = vsel %vm568, %v512, 0
        %v573 = vsel %vm568, %v513, 0
        %v576 = vsel %vm568, %v514, 0
        %v579 = vsel %vm568, %v515, 0
        %v582 = vsel %vm568, %v516, 0
        %v585 = vsel %vm568, %v517, 0
        %v588 = vsel %vm568, %v518, 0
        %v591 = vsel %vm568, %v519, 0
        %v594 = vsel %vm568, %v496, 0
        %v597 = vsel %vm568, %v497, 0
        %v600 = vsel %vm568, %v498, 0
        %v603 = vsel %vm568, %v499, 0
        %v606 = vsel %vm568, %v500, 0
        %v609 = vsel %vm568, %v501, 0
        %v612 = vsel %vm568, %v502, 0
        %v615 = vsel %vm568, %v503, 0
        %v618 = vsel %vm568, %v504, 0
        %v621 = vsel %vm568, %v505, 0
        %v624 = vsel %vm568, %v506, 0
        %v627 = vsel %vm568, %v507, 0
        %v630 = vsel %vm568, %v508, 0
        %v633 = vsel %vm568, %v509, 0
        %v636 = vsel %vm568, %v510, 0
        %v639 = vsel %vm568, %v511, 0
        %641 = vmatpush.xpose.msra.mxu0 %v639
        %642 = vmatpush.xpose.msra.mxu0 %v636
        %643 = vmatpush.xpose.msra.mxu0 %v633
        %644 = vmatpush.xpose.msra.mxu0 %v630
        %645 = vmatpush.xpose.msra.mxu0 %v627
        %646 = vmatpush.xpose.msra.mxu0 %v624
        %647 = vmatpush.xpose.msra.mxu0 %v621
        %648 = vmatpush.xpose.msra.mxu0 %v618
        %649 = vmatpush.xpose.msra.mxu0 %v615
        %650 = vmatpush.xpose.msra.mxu0 %v612
        %651 = vmatpush.xpose.msra.mxu0 %v609
        %652 = vmatpush.xpose.msra.mxu0 %v606
        %653 = vmatpush.xpose.msra.mxu0 %v603
        %654 = vmatpush.xpose.msra.mxu0 %v600
        %655 = vmatpush.xpose.msra.mxu0 %v597
        %656 = vmatpush.xpose.msra.mxu0 %v594
        %657 = vmatmul.f32.gmra.mxu0 %v570
        %v658 = vpop.f32.mrf.mxu0
        %v659 = vadd.f32 %v531, %v658
        %660 = vmatmul.f32.gmra.mxu0 %v573
        %v661 = vpop.f32.mrf.mxu0
        %v662 = vadd.f32 %v536, %v661
        %663 = vmatmul.f32.gmra.mxu0 %v576
        %v664 = vpop.f32.mrf.mxu0
        %v665 = vadd.f32 %v541, %v664
        %666 = vmatmul.f32.gmra.mxu0 %v579
        %v667 = vpop.f32.mrf.mxu0
        %v668 = vadd.f32 %v546, %v667
        %669 = vmatmul.f32.gmra.mxu0 %v582
        %v670 = vpop.f32.mrf.mxu0
        %v671 = vadd.f32 %v551, %v670
        %672 = vmatmul.f32.gmra.mxu0 %v585
        %v673 = vpop.f32.mrf.mxu0
        %v674 = vadd.f32 %v556, %v673
        %675 = vmatmul.f32.gmra.mxu0 %v588
        %v676 = vpop.f32.mrf.mxu0
        %v677 = vadd.f32 %v561, %v676
        %678 = vmatmul.f32.gmra.mxu0 %v591
        %v679 = vpop.f32.mrf.mxu0
        %v680 = vadd.f32 %v566, %v679
        %681 = vdwg.mxu0
        %v682 = vmax.f32 %v659, 0.0
        %v683 = vmax.f32 %v662, 0.0
        %v684 = vmax.f32 %v665, 0.0
        %v685 = vmax.f32 %v668, 0.0
        %v686 = vmax.f32 %v671, 0.0
        %v687 = vmax.f32 %v674, 0.0
        %v688 = vmax.f32 %v677, 0.0
        %v689 = vmax.f32 %v680, 0.0
        %v690 = vld [vmem:[%s3] sm:$0xff]
        %v691 = vld [vmem:[%s3 + $0x8] sm:$0xff]
        %v692 = vld [vmem:[%s3 + $0x10] sm:$0xff]
        %v693 = vld [vmem:[%s3 + $0x18] sm:$0xff]
        %v694 = vld [vmem:[%s3 + $0x20] sm:$0xff]
        %v695 = vld [vmem:[%s3 + $0x28] sm:$0xff]
        %v696 = vld [vmem:[%s3 + $0x30] sm:$0xff]
        %v697 = vld [vmem:[%s3 + $0x38] sm:$0xff]
        %v698 = vld [vmem:[%s3 + $0x40] sm:$0xff]
        %v699 = vld [vmem:[%s3 + $0x48] sm:$0xff]
        %v700 = vld [vmem:[%s3 + $0x50] sm:$0xff]
        %v701 = vld [vmem:[%s3 + $0x58] sm:$0xff]
        %v702 = vld [vmem:[%s3 + $0x60] sm:$0xff]
        %v703 = vld [vmem:[%s3 + $0x68] sm:$0xff]
        %v704 = vld [vmem:[%s3 + $0x70] sm:$0xff]
        %v705 = vld [vmem:[%s3 + $0x78] sm:$0xff]
        %v706 = vld [vmem:[%s4] sm:$0xff]
        %v707 = vld [vmem:[%s4 + $0x8] sm:$0xff]
        %v708 = vld [vmem:[%s4 + $0x10] sm:$0xff]
        %v709 = vld [vmem:[%s4 + $0x18] sm:$0xff]
        %v710 = vld [vmem:[%s4 + $0x20] sm:$0xff]
        %v711 = vld [vmem:[%s4 + $0x28] sm:$0xff]
        %v712 = vld [vmem:[%s4 + $0x30] sm:$0xff]
        %v713 = vld [vmem:[%s4 + $0x38] sm:$0xff]
        %v714 = vld [vmem:[%s4 + $0x40] sm:$0xff]
        %v715 = vld [vmem:[%s4 + $0x48] sm:$0xff]
        %v716 = vld [vmem:[%s4 + $0x50] sm:$0xff]
        %v717 = vld [vmem:[%s4 + $0x58] sm:$0xff]
        %v718 = vld [vmem:[%s4 + $0x60] sm:$0xff]
        %v719 = vld [vmem:[%s4 + $0x68] sm:$0xff]
        %v720 = vld [vmem:[%s4 + $0x70] sm:$0xff]
        %v721 = vld [vmem:[%s4 + $0x78] sm:$0xff]
        %723 = vset.pattern.permute.xlu0 0
        %724 = vperm.xlu0 %723, %v706
        %v725 = vpop.permute.xlu0 %724
        %728 = vset.pattern.permute.xlu0 0
        %729 = vperm.xlu0 %728, %v707
        %v730 = vpop.permute.xlu0 %729
        %733 = vset.pattern.permute.xlu0 0
        %734 = vperm.xlu0 %733, %v708
        %v735 = vpop.permute.xlu0 %734
        %738 = vset.pattern.permute.xlu0 0
        %739 = vperm.xlu0 %738, %v709
        %v740 = vpop.permute.xlu0 %739
        %743 = vset.pattern.permute.xlu0 0
        %744 = vperm.xlu0 %743, %v710
        %v745 = vpop.permute.xlu0 %744
        %748 = vset.pattern.permute.xlu0 0
        %749 = vperm.xlu0 %748, %v711
        %v750 = vpop.permute.xlu0 %749
        %753 = vset.pattern.permute.xlu0 0
        %754 = vperm.xlu0 %753, %v712
        %v755 = vpop.permute.xlu0 %754
        %758 = vset.pattern.permute.xlu0 0
        %759 = vperm.xlu0 %758, %v713
        %v760 = vpop.permute.xlu0 %759
        %763 = vset.pattern.permute.xlu0 0
        %764 = vperm.xlu0 %763, %v714
        %v765 = vpop.permute.xlu0 %764
        %768 = vset.pattern.permute.xlu0 0
        %769 = vperm.xlu0 %768, %v715
        %v770 = vpop.permute.xlu0 %769
        %773 = vset.pattern.permute.xlu0 0
        %774 = vperm.xlu0 %773, %v716
        %v775 = vpop.permute.xlu0 %774
        %778 = vset.pattern.permute.xlu0 0
        %779 = vperm.xlu0 %778, %v717
        %v780 = vpop.permute.xlu0 %779
        %783 = vset.pattern.permute.xlu0 0
        %784 = vperm.xlu0 %783, %v718
        %v785 = vpop.permute.xlu0 %784
        %788 = vset.pattern.permute.xlu0 0
        %789 = vperm.xlu0 %788, %v719
        %v790 = vpop.permute.xlu0 %789
        %793 = vset.pattern.permute.xlu0 0
        %794 = vperm.xlu0 %793, %v720
        %v795 = vpop.permute.xlu0 %794
        %798 = vset.pattern.permute.xlu0 0
        %799 = vperm.xlu0 %798, %v721
        %v800 = vpop.permute.xlu0 %799
        %vm802 = vcmask 523264
        %v804 = vsel %vm802, %v690, 0
        %v807 = vsel %vm802, %v691, 0
        %v810 = vsel %vm802, %v692, 0
        %v813 = vsel %vm802, %v693, 0
        %v816 = vsel %vm802, %v694, 0
        %v819 = vsel %vm802, %v695, 0
        %v822 = vsel %vm802, %v696, 0
        %v825 = vsel %vm802, %v697, 0
        %v828 = vsel %vm802, %v698, 0
        %v831 = vsel %vm802, %v699, 0
        %v834 = vsel %vm802, %v700, 0
        %v837 = vsel %vm802, %v701, 0
        %v840 = vsel %vm802, %v702, 0
        %v843 = vsel %vm802, %v703, 0
        %v846 = vsel %vm802, %v704, 0
        %v849 = vsel %vm802, %v705, 0
        %851 = vmatpush.msra.mxu0 0.0
        %852 = vmatpush.msra.mxu0 0.0
        %853 = vmatpush.msra.mxu0 0.0
        %854 = vmatpush.msra.mxu0 0.0
        %855 = vmatpush.msra.mxu0 0.0
        %856 = vmatpush.msra.mxu0 0.0
        %857 = vmatpush.msra.mxu0 0.0
        %858 = vmatpush.msra.mxu0 0.0
        %859 = vmatpush.msra.mxu0 %v689
        %860 = vmatpush.msra.mxu0 %v688
        %861 = vmatpush.msra.mxu0 %v687
        %862 = vmatpush.msra.mxu0 %v686
        %863 = vmatpush.msra.mxu0 %v685
        %864 = vmatpush.msra.mxu0 %v684
        %865 = vmatpush.msra.mxu0 %v683
        %866 = vmatpush.msra.mxu0 %v682
        %867 = vmatmul.f32.gmra.mxu0 %v804
        %v868 = vpop.f32.mrf.mxu0
        %v869 = vadd.f32 %v725, %v868
        %870 = vmatmul.f32.gmra.mxu0 %v807
        %v871 = vpop.f32.mrf.mxu0
        %v872 = vadd.f32 %v730, %v871
        %873 = vmatmul.f32.gmra.mxu0 %v810
        %v874 = vpop.f32.mrf.mxu0
        %v875 = vadd.f32 %v735, %v874
        %876 = vmatmul.f32.gmra.mxu0 %v813
        %v877 = vpop.f32.mrf.mxu0
        %v878 = vadd.f32 %v740, %v877
        %879 = vmatmul.f32.gmra.mxu0 %v816
        %v880 = vpop.f32.mrf.mxu0
        %v881 = vadd.f32 %v745, %v880
        %882 = vmatmul.f32.gmra.mxu0 %v819
        %v883 = vpop.f32.mrf.mxu0
        %v884 = vadd.f32 %v750, %v883
        %885 = vmatmul.f32.gmra.mxu0 %v822
        %v886 = vpop.f32.mrf.mxu0
        %v887 = vadd.f32 %v755, %v886
        %888 = vmatmul.f32.gmra.mxu0 %v825
        %v889 = vpop.f32.mrf.mxu0
        %v890 = vadd.f32 %v760, %v889
        %891 = vmatmul.f32.gmra.mxu0 %v828
        %v892 = vpop.f32.mrf.mxu0
        %v893 = vadd.f32 %v765, %v892
        %894 = vmatmul.f32.gmra.mxu0 %v831
        %v895 = vpop.f32.mrf.mxu0
        %v896 = vadd.f32 %v770, %v895
        %897 = vmatmul.f32.gmra.mxu0 %v834
        %v898 = vpop.f32.mrf.mxu0
        %v899 = vadd.f32 %v775, %v898
        %900 = vmatmul.f32.gmra.mxu0 %v837
        %v901 = vpop.f32.mrf.mxu0
        %v902 = vadd.f32 %v780, %v901
        %903 = vmatmul.f32.gmra.mxu0 %v840
        %v904 = vpop.f32.mrf.mxu0
        %v905 = vadd.f32 %v785, %v904
        %906 = vmatmul.f32.gmra.mxu0 %v843
        %v907 = vpop.f32.mrf.mxu0
        %v908 = vadd.f32 %v790, %v907
        %909 = vmatmul.f32.gmra.mxu0 %v846
        %v910 = vpop.f32.mrf.mxu0
        %v911 = vadd.f32 %v795, %v910
        %912 = vmatmul.f32.gmra.mxu0 %v849
        %v913 = vpop.f32.mrf.mxu0
        %v914 = vadd.f32 %v800, %v913
        %915 = vdwg.mxu0
        %v916 = vmax.f32 %v869, 0.0
        %v917 = vmax.f32 %v872, 0.0
        %v918 = vmax.f32 %v875, 0.0
        %v919 = vmax.f32 %v878, 0.0
        %v920 = vmax.f32 %v881, 0.0
        %v921 = vmax.f32 %v884, 0.0
        %v922 = vmax.f32 %v887, 0.0
        %v923 = vmax.f32 %v890, 0.0
        %v924 = vmax.f32 %v893, 0.0
        %v925 = vmax.f32 %v896, 0.0
        %v926 = vmax.f32 %v899, 0.0
        %v927 = vmax.f32 %v902, 0.0
        %v928 = vmax.f32 %v905, 0.0
        %v929 = vmax.f32 %v908, 0.0
        %v930 = vmax.f32 %v911, 0.0
        %v931 = vmax.f32 %v914, 0.0
        %v932 = vld [vmem:[%s5] sm:$0xff]
        %v933 = vld [vmem:[%s5 + $0x8] sm:$0xff]
        %v934 = vld [vmem:[%s5 + $0x10] sm:$0xff]
        %v935 = vld [vmem:[%s5 + $0x18] sm:$0xff]
        %v936 = vld [vmem:[%s5 + $0x20] sm:$0xff]
        %v937 = vld [vmem:[%s5 + $0x28] sm:$0xff]
        %v938 = vld [vmem:[%s5 + $0x30] sm:$0xff]
        %v939 = vld [vmem:[%s5 + $0x38] sm:$0xff]
        %v940 = vld [vmem:[%s5 + $0x40] sm:$0xff]
        %v941 = vld [vmem:[%s5 + $0x48] sm:$0xff]
        %v942 = vld [vmem:[%s5 + $0x50] sm:$0xff]
        %v943 = vld [vmem:[%s5 + $0x58] sm:$0xff]
        %v944 = vld [vmem:[%s5 + $0x60] sm:$0xff]
        %v945 = vld [vmem:[%s5 + $0x68] sm:$0xff]
        %v946 = vld [vmem:[%s5 + $0x70] sm:$0xff]
        %v947 = vld [vmem:[%s5 + $0x78] sm:$0xff]
        %v948 = vld [vmem:[%s5 + $0x80] sm:$0xff]
        %v949 = vld [vmem:[%s5 + $0x88] sm:$0xff]
        %v950 = vld [vmem:[%s5 + $0x90] sm:$0xff]
        %v951 = vld [vmem:[%s5 + $0x98] sm:$0xff]
        %v952 = vld [vmem:[%s5 + $0xa0] sm:$0xff]
        %v953 = vld [vmem:[%s5 + $0xa8] sm:$0xff]
        %v954 = vld [vmem:[%s5 + $0xb0] sm:$0xff]
        %v955 = vld [vmem:[%s5 + $0xb8] sm:$0xff]
        %v956 = vld [vmem:[%s5 + $0xc0] sm:$0xff]
        %v957 = vld [vmem:[%s5 + $0xc8] sm:$0xff]
        %v958 = vld [vmem:[%s5 + $0xd0] sm:$0xff]
        %v959 = vld [vmem:[%s5 + $0xd8] sm:$0xff]
        %v960 = vld [vmem:[%s5 + $0xe0] sm:$0xff]
        %v961 = vld [vmem:[%s5 + $0xe8] sm:$0xff]
        %v962 = vld [vmem:[%s5 + $0xf0] sm:$0xff]
        %v963 = vld [vmem:[%s5 + $0xf8] sm:$0xff]
        %v964 = vld [vmem:[%s6] sm:$0xff]
        %v965 = vld [vmem:[%s6 + $0x8] sm:$0xff]
        %v966 = vld [vmem:[%s6 + $0x10] sm:$0xff]
        %v967 = vld [vmem:[%s6 + $0x18] sm:$0xff]
        %v968 = vld [vmem:[%s6 + $0x20] sm:$0xff]
        %v969 = vld [vmem:[%s6 + $0x28] sm:$0xff]
        %v970 = vld [vmem:[%s6 + $0x30] sm:$0xff]
        %v971 = vld [vmem:[%s6 + $0x38] sm:$0xff]
        %v972 = vld [vmem:[%s6 + $0x40] sm:$0xff]
        %v973 = vld [vmem:[%s6 + $0x48] sm:$0xff]
        %v974 = vld [vmem:[%s6 + $0x50] sm:$0xff]
        %v975 = vld [vmem:[%s6 + $0x58] sm:$0xff]
        %v976 = vld [vmem:[%s6 + $0x60] sm:$0xff]
        %v977 = vld [vmem:[%s6 + $0x68] sm:$0xff]
        %v978 = vld [vmem:[%s6 + $0x70] sm:$0xff]
        %v979 = vld [vmem:[%s6 + $0x78] sm:$0xff]
        %v980 = vld [vmem:[%s6 + $0x80] sm:$0xff]
        %v981 = vld [vmem:[%s6 + $0x88] sm:$0xff]
        %v982 = vld [vmem:[%s6 + $0x90] sm:$0xff]
        %v983 = vld [vmem:[%s6 + $0x98] sm:$0xff]
        %v984 = vld [vmem:[%s6 + $0xa0] sm:$0xff]
        %v985 = vld [vmem:[%s6 + $0xa8] sm:$0xff]
        %v986 = vld [vmem:[%s6 + $0xb0] sm:$0xff]
        %v987 = vld [vmem:[%s6 + $0xb8] sm:$0xff]
        %v988 = vld [vmem:[%s6 + $0xc0] sm:$0xff]
        %v989 = vld [vmem:[%s6 + $0xc8] sm:$0xff]
        %v990 = vld [vmem:[%s6 + $0xd0] sm:$0xff]
        %v991 = vld [vmem:[%s6 + $0xd8] sm:$0xff]
        %v992 = vld [vmem:[%s6 + $0xe0] sm:$0xff]
        %v993 = vld [vmem:[%s6 + $0xe8] sm:$0xff]
        %v994 = vld [vmem:[%s6 + $0xf0] sm:$0xff]
        %v995 = vld [vmem:[%s6 + $0xf8] sm:$0xff]
        %997 = vset.pattern.permute.xlu0 0
        %998 = vperm.xlu0 %997, %v964
        %v999 = vpop.permute.xlu0 %998
        %1002 = vset.pattern.permute.xlu0 0
        %1003 = vperm.xlu0 %1002, %v965
        %v1004 = vpop.permute.xlu0 %1003
        %1007 = vset.pattern.permute.xlu0 0
        %1008 = vperm.xlu0 %1007, %v966
        %v1009 = vpop.permute.xlu0 %1008
        %1012 = vset.pattern.permute.xlu0 0
        %1013 = vperm.xlu0 %1012, %v967
        %v1014 = vpop.permute.xlu0 %1013
        %1017 = vset.pattern.permute.xlu0 0
        %1018 = vperm.xlu0 %1017, %v968
        %v1019 = vpop.permute.xlu0 %1018
        %1022 = vset.pattern.permute.xlu0 0
        %1023 = vperm.xlu0 %1022, %v969
        %v1024 = vpop.permute.xlu0 %1023
        %1027 = vset.pattern.permute.xlu0 0
        %1028 = vperm.xlu0 %1027, %v970
        %v1029 = vpop.permute.xlu0 %1028
        %1032 = vset.pattern.permute.xlu0 0
        %1033 = vperm.xlu0 %1032, %v971
        %v1034 = vpop.permute.xlu0 %1033
        %1037 = vset.pattern.permute.xlu0 0
        %1038 = vperm.xlu0 %1037, %v972
        %v1039 = vpop.permute.xlu0 %1038
        %1042 = vset.pattern.permute.xlu0 0
        %1043 = vperm.xlu0 %1042, %v973
        %v1044 = vpop.permute.xlu0 %1043
        %1047 = vset.pattern.permute.xlu0 0
        %1048 = vperm.xlu0 %1047, %v974
        %v1049 = vpop.permute.xlu0 %1048
        %1052 = vset.pattern.permute.xlu0 0
        %1053 = vperm.xlu0 %1052, %v975
        %v1054 = vpop.permute.xlu0 %1053
        %1057 = vset.pattern.permute.xlu0 0
        %1058 = vperm.xlu0 %1057, %v976
        %v1059 = vpop.permute.xlu0 %1058
        %1062 = vset.pattern.permute.xlu0 0
        %1063 = vperm.xlu0 %1062, %v977
        %v1064 = vpop.permute.xlu0 %1063
        %1067 = vset.pattern.permute.xlu0 0
        %1068 = vperm.xlu0 %1067, %v978
        %v1069 = vpop.permute.xlu0 %1068
        %1072 = vset.pattern.permute.xlu0 0
        %1073 = vperm.xlu0 %1072, %v979
        %v1074 = vpop.permute.xlu0 %1073
        %1077 = vset.pattern.permute.xlu0 0
        %1078 = vperm.xlu0 %1077, %v980
        %v1079 = vpop.permute.xlu0 %1078
        %1082 = vset.pattern.permute.xlu0 0
        %1083 = vperm.xlu0 %1082, %v981
        %v1084 = vpop.permute.xlu0 %1083
        %1087 = vset.pattern.permute.xlu0 0
        %1088 = vperm.xlu0 %1087, %v982
        %v1089 = vpop.permute.xlu0 %1088
        %1092 = vset.pattern.permute.xlu0 0
        %1093 = vperm.xlu0 %1092, %v983
        %v1094 = vpop.permute.xlu0 %1093
        %1097 = vset.pattern.permute.xlu0 0
        %1098 = vperm.xlu0 %1097, %v984
        %v1099 = vpop.permute.xlu0 %1098
        %1102 = vset.pattern.permute.xlu0 0
        %1103 = vperm.xlu0 %1102, %v985
        %v1104 = vpop.permute.xlu0 %1103
        %1107 = vset.pattern.permute.xlu0 0
        %1108 = vperm.xlu0 %1107, %v986
        %v1109 = vpop.permute.xlu0 %1108
        %1112 = vset.pattern.permute.xlu0 0
        %1113 = vperm.xlu0 %1112, %v987
        %v1114 = vpop.permute.xlu0 %1113
        %1117 = vset.pattern.permute.xlu0 0
        %1118 = vperm.xlu0 %1117, %v988
        %v1119 = vpop.permute.xlu0 %1118
        %1122 = vset.pattern.permute.xlu0 0
        %1123 = vperm.xlu0 %1122, %v989
        %v1124 = vpop.permute.xlu0 %1123
        %1127 = vset.pattern.permute.xlu0 0
        %1128 = vperm.xlu0 %1127, %v990
        %v1129 = vpop.permute.xlu0 %1128
        %1132 = vset.pattern.permute.xlu0 0
        %1133 = vperm.xlu0 %1132, %v991
        %v1134 = vpop.permute.xlu0 %1133
        %1137 = vset.pattern.permute.xlu0 0
        %1138 = vperm.xlu0 %1137, %v992
        %v1139 = vpop.permute.xlu0 %1138
        %1142 = vset.pattern.permute.xlu0 0
        %1143 = vperm.xlu0 %1142, %v993
        %v1144 = vpop.permute.xlu0 %1143
        %1147 = vset.pattern.permute.xlu0 0
        %1148 = vperm.xlu0 %1147, %v994
        %v1149 = vpop.permute.xlu0 %1148
        %1152 = vset.pattern.permute.xlu0 0
        %1153 = vperm.xlu0 %1152, %v995
        %v1154 = vpop.permute.xlu0 %1153
        %1156 = vmatpush.msra.mxu0 %v931
        %1157 = vmatpush.msra.mxu0 %v930
        %1158 = vmatpush.msra.mxu0 %v929
        %1159 = vmatpush.msra.mxu0 %v928
        %1160 = vmatpush.msra.mxu0 %v927
        %1161 = vmatpush.msra.mxu0 %v926
        %1162 = vmatpush.msra.mxu0 %v925
        %1163 = vmatpush.msra.mxu0 %v924
        %1164 = vmatpush.msra.mxu0 %v923
        %1165 = vmatpush.msra.mxu0 %v922
        %1166 = vmatpush.msra.mxu0 %v921
        %1167 = vmatpush.msra.mxu0 %v920
        %1168 = vmatpush.msra.mxu0 %v919
        %1169 = vmatpush.msra.mxu0 %v918
        %1170 = vmatpush.msra.mxu0 %v917
        %1171 = vmatpush.msra.mxu0 %v916
        %1172 = vmatmul.f32.gmra.mxu0 %v932
        %v1173 = vpop.f32.mrf.mxu0
        %v1174 = vadd.f32 %v999, %v1173
        %1175 = vmatmul.f32.gmra.mxu0 %v933
        %v1176 = vpop.f32.mrf.mxu0
        %v1177 = vadd.f32 %v1004, %v1176
        %1178 = vmatmul.f32.gmra.mxu0 %v934
        %v1179 = vpop.f32.mrf.mxu0
        %v1180 = vadd.f32 %v1009, %v1179
        %1181 = vmatmul.f32.gmra.mxu0 %v935
        %v1182 = vpop.f32.mrf.mxu0
        %v1183 = vadd.f32 %v1014, %v1182
        %1184 = vmatmul.f32.gmra.mxu0 %v936
        %v1185 = vpop.f32.mrf.mxu0
        %v1186 = vadd.f32 %v1019, %v1185
        %1187 = vmatmul.f32.gmra.mxu0 %v937
        %v1188 = vpop.f32.mrf.mxu0
        %v1189 = vadd.f32 %v1024, %v1188
        %1190 = vmatmul.f32.gmra.mxu0 %v938
        %v1191 = vpop.f32.mrf.mxu0
        %v1192 = vadd.f32 %v1029, %v1191
        %1193 = vmatmul.f32.gmra.mxu0 %v939
        %v1194 = vpop.f32.mrf.mxu0
        %v1195 = vadd.f32 %v1034, %v1194
        %1196 = vmatmul.f32.gmra.mxu0 %v940
        %v1197 = vpop.f32.mrf.mxu0
        %v1198 = vadd.f32 %v1039, %v1197
        %1199 = vmatmul.f32.gmra.mxu0 %v941
        %v1200 = vpop.f32.mrf.mxu0
        %v1201 = vadd.f32 %v1044, %v1200
        %1202 = vmatmul.f32.gmra.mxu0 %v942
        %v1203 = vpop.f32.mrf.mxu0
        %v1204 = vadd.f32 %v1049, %v1203
        %1205 = vmatmul.f32.gmra.mxu0 %v943
        %v1206 = vpop.f32.mrf.mxu0
        %v1207 = vadd.f32 %v1054, %v1206
        %1208 = vmatmul.f32.gmra.mxu0 %v944
        %v1209 = vpop.f32.mrf.mxu0
        %v1210 = vadd.f32 %v1059, %v1209
        %1211 = vmatmul.f32.gmra.mxu0 %v945
        %v1212 = vpop.f32.mrf.mxu0
        %v1213 = vadd.f32 %v1064, %v1212
        %1214 = vmatmul.f32.gmra.mxu0 %v946
        %v1215 = vpop.f32.mrf.mxu0
        %v1216 = vadd.f32 %v1069, %v1215
        %1217 = vmatmul.f32.gmra.mxu0 %v947
        %v1218 = vpop.f32.mrf.mxu0
        %v1219 = vadd.f32 %v1074, %v1218
        %1220 = vmatmul.f32.gmra.mxu0 %v948
        %v1221 = vpop.f32.mrf.mxu0
        %v1222 = vadd.f32 %v1079, %v1221
        %1223 = vmatmul.f32.gmra.mxu0 %v949
        %v1224 = vpop.f32.mrf.mxu0
        %v1225 = vadd.f32 %v1084, %v1224
        %1226 = vmatmul.f32.gmra.mxu0 %v950
        %v1227 = vpop.f32.mrf.mxu0
        %v1228 = vadd.f32 %v1089, %v1227
        %1229 = vmatmul.f32.gmra.mxu0 %v951
        %v1230 = vpop.f32.mrf.mxu0
        %v1231 = vadd.f32 %v1094, %v1230
        %1232 = vmatmul.f32.gmra.mxu0 %v952
        %v1233 = vpop.f32.mrf.mxu0
        %v1234 = vadd.f32 %v1099, %v1233
        %1235 = vmatmul.f32.gmra.mxu0 %v953
        %v1236 = vpop.f32.mrf.mxu0
        %v1237 = vadd.f32 %v1104, %v1236
        %1238 = vmatmul.f32.gmra.mxu0 %v954
        %v1239 = vpop.f32.mrf.mxu0
        %v1240 = vadd.f32 %v1109, %v1239
        %1241 = vmatmul.f32.gmra.mxu0 %v955
        %v1242 = vpop.f32.mrf.mxu0
        %v1243 = vadd.f32 %v1114, %v1242
        %1244 = vmatmul.f32.gmra.mxu0 %v956
        %v1245 = vpop.f32.mrf.mxu0
        %v1246 = vadd.f32 %v1119, %v1245
        %1247 = vmatmul.f32.gmra.mxu0 %v957
        %v1248 = vpop.f32.mrf.mxu0
        %v1249 = vadd.f32 %v1124, %v1248
        %1250 = vmatmul.f32.gmra.mxu0 %v958
        %v1251 = vpop.f32.mrf.mxu0
        %v1252 = vadd.f32 %v1129, %v1251
        %1253 = vmatmul.f32.gmra.mxu0 %v959
        %v1254 = vpop.f32.mrf.mxu0
        %v1255 = vadd.f32 %v1134, %v1254
        %1256 = vmatmul.f32.gmra.mxu0 %v960
        %v1257 = vpop.f32.mrf.mxu0
        %v1258 = vadd.f32 %v1139, %v1257
        %1259 = vmatmul.f32.gmra.mxu0 %v961
        %v1260 = vpop.f32.mrf.mxu0
        %v1261 = vadd.f32 %v1144, %v1260
        %1262 = vmatmul.f32.gmra.mxu0 %v962
        %v1263 = vpop.f32.mrf.mxu0
        %v1264 = vadd.f32 %v1149, %v1263
        %1265 = vmatmul.f32.gmra.mxu0 %v963
        %v1266 = vpop.f32.mrf.mxu0
        %v1267 = vadd.f32 %v1154, %v1266
        %1268 = vdwg.mxu0
        %v1269 = vmax.f32 %v1174, 0.0
        %v1270 = vmax.f32 %v1177, 0.0
        %v1271 = vmax.f32 %v1180, 0.0
        %v1272 = vmax.f32 %v1183, 0.0
        %v1273 = vmax.f32 %v1186, 0.0
        %v1274 = vmax.f32 %v1189, 0.0
        %v1275 = vmax.f32 %v1192, 0.0
        %v1276 = vmax.f32 %v1195, 0.0
        %v1277 = vmax.f32 %v1198, 0.0
        %v1278 = vmax.f32 %v1201, 0.0
        %v1279 = vmax.f32 %v1204, 0.0
        %v1280 = vmax.f32 %v1207, 0.0
        %v1281 = vmax.f32 %v1210, 0.0
        %v1282 = vmax.f32 %v1213, 0.0
        %v1283 = vmax.f32 %v1216, 0.0
        %v1284 = vmax.f32 %v1219, 0.0
        %v1285 = vmax.f32 %v1222, 0.0
        %v1286 = vmax.f32 %v1225, 0.0
        %v1287 = vmax.f32 %v1228, 0.0
        %v1288 = vmax.f32 %v1231, 0.0
        %v1289 = vmax.f32 %v1234, 0.0
        %v1290 = vmax.f32 %v1237, 0.0
        %v1291 = vmax.f32 %v1240, 0.0
        %v1292 = vmax.f32 %v1243, 0.0
        %v1293 = vmax.f32 %v1246, 0.0
        %v1294 = vmax.f32 %v1249, 0.0
        %v1295 = vmax.f32 %v1252, 0.0
        %v1296 = vmax.f32 %v1255, 0.0
        %v1297 = vmax.f32 %v1258, 0.0
        %v1298 = vmax.f32 %v1261, 0.0
        %v1299 = vmax.f32 %v1264, 0.0
        %v1300 = vmax.f32 %v1267, 0.0
        %v1301 = vld [vmem:[%s7] sm:$0xff]
        %v1302 = vld [vmem:[%s7 + $0x8] sm:$0xff]
        %v1303 = vld [vmem:[%s7 + $0x10] sm:$0xff]
        %v1304 = vld [vmem:[%s7 + $0x18] sm:$0xff]
        %v1305 = vld [vmem:[%s7 + $0x20] sm:$0xff]
        %v1306 = vld [vmem:[%s7 + $0x28] sm:$0xff]
        %v1307 = vld [vmem:[%s7 + $0x30] sm:$0xff]
        %v1308 = vld [vmem:[%s7 + $0x38] sm:$0xff]
        %v1309 = vld [vmem:[%s7 + $0x40] sm:$0xff]
        %v1310 = vld [vmem:[%s7 + $0x48] sm:$0xff]
        %v1311 = vld [vmem:[%s7 + $0x50] sm:$0xff]
        %v1312 = vld [vmem:[%s7 + $0x58] sm:$0xff]
        %v1313 = vld [vmem:[%s7 + $0x60] sm:$0xff]
        %v1314 = vld [vmem:[%s7 + $0x68] sm:$0xff]
        %v1315 = vld [vmem:[%s7 + $0x70] sm:$0xff]
        %v1316 = vld [vmem:[%s7 + $0x78] sm:$0xff]
        %v1317 = vld [vmem:[%s7 + $0x80] sm:$0xff]
        %v1318 = vld [vmem:[%s7 + $0x88] sm:$0xff]
        %v1319 = vld [vmem:[%s7 + $0x90] sm:$0xff]
        %v1320 = vld [vmem:[%s7 + $0x98] sm:$0xff]
        %v1321 = vld [vmem:[%s7 + $0xa0] sm:$0xff]
        %v1322 = vld [vmem:[%s7 + $0xa8] sm:$0xff]
        %v1323 = vld [vmem:[%s7 + $0xb0] sm:$0xff]
        %v1324 = vld [vmem:[%s7 + $0xb8] sm:$0xff]
        %v1325 = vld [vmem:[%s7 + $0xc0] sm:$0xff]
        %v1326 = vld [vmem:[%s7 + $0xc8] sm:$0xff]
        %v1327 = vld [vmem:[%s7 + $0xd0] sm:$0xff]
        %v1328 = vld [vmem:[%s7 + $0xd8] sm:$0xff]
        %v1329 = vld [vmem:[%s7 + $0xe0] sm:$0xff]
        %v1330 = vld [vmem:[%s7 + $0xe8] sm:$0xff]
        %v1331 = vld [vmem:[%s7 + $0xf0] sm:$0xff]
        %v1332 = vld [vmem:[%s7 + $0xf8] sm:$0xff]
        %v1333 = vld [vmem:[%s8] sm:$0xff]
        %v1334 = vld [vmem:[%s8 + $0x8] sm:$0xff]
        %v1335 = vld [vmem:[%s8 + $0x10] sm:$0xff]
        %v1336 = vld [vmem:[%s8 + $0x18] sm:$0xff]
        %v1337 = vld [vmem:[%s8 + $0x20] sm:$0xff]
        %v1338 = vld [vmem:[%s8 + $0x28] sm:$0xff]
        %v1339 = vld [vmem:[%s8 + $0x30] sm:$0xff]
        %v1340 = vld [vmem:[%s8 + $0x38] sm:$0xff]
        %v1341 = vld [vmem:[%s8 + $0x40] sm:$0xff]
        %v1342 = vld [vmem:[%s8 + $0x48] sm:$0xff]
        %v1343 = vld [vmem:[%s8 + $0x50] sm:$0xff]
        %v1344 = vld [vmem:[%s8 + $0x58] sm:$0xff]
        %v1345 = vld [vmem:[%s8 + $0x60] sm:$0xff]
        %v1346 = vld [vmem:[%s8 + $0x68] sm:$0xff]
        %v1347 = vld [vmem:[%s8 + $0x70] sm:$0xff]
        %v1348 = vld [vmem:[%s8 + $0x78] sm:$0xff]
        %1350 = vset.pattern.permute.xlu0 0
        %1351 = vperm.xlu0 %1350, %v1333
        %v1352 = vpop.permute.xlu0 %1351
        %1355 = vset.pattern.permute.xlu0 0
        %1356 = vperm.xlu0 %1355, %v1334
        %v1357 = vpop.permute.xlu0 %1356
        %1360 = vset.pattern.permute.xlu0 0
        %1361 = vperm.xlu0 %1360, %v1335
        %v1362 = vpop.permute.xlu0 %1361
        %1365 = vset.pattern.permute.xlu0 0
        %1366 = vperm.xlu0 %1365, %v1336
        %v1367 = vpop.permute.xlu0 %1366
        %1370 = vset.pattern.permute.xlu0 0
        %1371 = vperm.xlu0 %1370, %v1337
        %v1372 = vpop.permute.xlu0 %1371
        %1375 = vset.pattern.permute.xlu0 0
        %1376 = vperm.xlu0 %1375, %v1338
        %v1377 = vpop.permute.xlu0 %1376
        %1380 = vset.pattern.permute.xlu0 0
        %1381 = vperm.xlu0 %1380, %v1339
        %v1382 = vpop.permute.xlu0 %1381
        %1385 = vset.pattern.permute.xlu0 0
        %1386 = vperm.xlu0 %1385, %v1340
        %v1387 = vpop.permute.xlu0 %1386
        %1390 = vset.pattern.permute.xlu0 0
        %1391 = vperm.xlu0 %1390, %v1341
        %v1392 = vpop.permute.xlu0 %1391
        %1395 = vset.pattern.permute.xlu0 0
        %1396 = vperm.xlu0 %1395, %v1342
        %v1397 = vpop.permute.xlu0 %1396
        %1400 = vset.pattern.permute.xlu0 0
        %1401 = vperm.xlu0 %1400, %v1343
        %v1402 = vpop.permute.xlu0 %1401
        %1405 = vset.pattern.permute.xlu0 0
        %1406 = vperm.xlu0 %1405, %v1344
        %v1407 = vpop.permute.xlu0 %1406
        %1410 = vset.pattern.permute.xlu0 0
        %1411 = vperm.xlu0 %1410, %v1345
        %v1412 = vpop.permute.xlu0 %1411
        %1415 = vset.pattern.permute.xlu0 0
        %1416 = vperm.xlu0 %1415, %v1346
        %v1417 = vpop.permute.xlu0 %1416
        %1420 = vset.pattern.permute.xlu0 0
        %1421 = vperm.xlu0 %1420, %v1347
        %v1422 = vpop.permute.xlu0 %1421
        %1425 = vset.pattern.permute.xlu0 0
        %1426 = vperm.xlu0 %1425, %v1348
        %v1427 = vpop.permute.xlu0 %1426
        %1429 = vmatpush.msra.mxu0 %v1284
        %1430 = vmatpush.msra.mxu0 %v1283
        %1431 = vmatpush.msra.mxu0 %v1282
        %1432 = vmatpush.msra.mxu0 %v1281
        %1433 = vmatpush.msra.mxu0 %v1280
        %1434 = vmatpush.msra.mxu0 %v1279
        %1435 = vmatpush.msra.mxu0 %v1278
        %1436 = vmatpush.msra.mxu0 %v1277
        %1437 = vmatpush.msra.mxu0 %v1276
        %1438 = vmatpush.msra.mxu0 %v1275
        %1439 = vmatpush.msra.mxu0 %v1274
        %1440 = vmatpush.msra.mxu0 %v1273
        %1441 = vmatpush.msra.mxu0 %v1272
        %1442 = vmatpush.msra.mxu0 %v1271
        %1443 = vmatpush.msra.mxu0 %v1270
        %1444 = vmatpush.msra.mxu0 %v1269
        %1445 = vmatmul.f32.gmra.mxu0 %v1301
        %v1446 = vpop.f32.mrf.mxu0
        %v1447 = vadd.f32 %v1352, %v1446
        %1448 = vmatmul.f32.gmra.mxu0 %v1303
        %v1449 = vpop.f32.mrf.mxu0
        %v1450 = vadd.f32 %v1357, %v1449
        %1451 = vmatmul.f32.gmra.mxu0 %v1305
        %v1452 = vpop.f32.mrf.mxu0
        %v1453 = vadd.f32 %v1362, %v1452
        %1454 = vmatmul.f32.gmra.mxu0 %v1307
        %v1455 = vpop.f32.mrf.mxu0
        %v1456 = vadd.f32 %v1367, %v1455
        %1457 = vmatmul.f32.gmra.mxu0 %v1309
        %v1458 = vpop.f32.mrf.mxu0
        %v1459 = vadd.f32 %v1372, %v1458
        %1460 = vmatmul.f32.gmra.mxu0 %v1311
        %v1461 = vpop.f32.mrf.mxu0
        %v1462 = vadd.f32 %v1377, %v1461
        %1463 = vmatmul.f32.gmra.mxu0 %v1313
        %v1464 = vpop.f32.mrf.mxu0
        %v1465 = vadd.f32 %v1382, %v1464
        %1466 = vmatmul.f32.gmra.mxu0 %v1315
        %v1467 = vpop.f32.mrf.mxu0
        %v1468 = vadd.f32 %v1387, %v1467
        %1469 = vmatmul.f32.gmra.mxu0 %v1317
        %v1470 = vpop.f32.mrf.mxu0
        %v1471 = vadd.f32 %v1392, %v1470
        %1472 = vmatmul.f32.gmra.mxu0 %v1319
        %v1473 = vpop.f32.mrf.mxu0
        %v1474 = vadd.f32 %v1397, %v1473
        %1475 = vmatmul.f32.gmra.mxu0 %v1321
        %v1476 = vpop.f32.mrf.mxu0
        %v1477 = vadd.f32 %v1402, %v1476
        %1478 = vmatmul.f32.gmra.mxu0 %v1323
        %v1479 = vpop.f32.mrf.mxu0
        %v1480 = vadd.f32 %v1407, %v1479
        %1481 = vmatmul.f32.gmra.mxu0 %v1325
        %v1482 = vpop.f32.mrf.mxu0
        %v1483 = vadd.f32 %v1412, %v1482
        %1484 = vmatmul.f32.gmra.mxu0 %v1327
        %v1485 = vpop.f32.mrf.mxu0
        %v1486 = vadd.f32 %v1417, %v1485
        %1487 = vmatmul.f32.gmra.mxu0 %v1329
        %v1488 = vpop.f32.mrf.mxu0
        %v1489 = vadd.f32 %v1422, %v1488
        %1490 = vmatmul.f32.gmra.mxu0 %v1331
        %v1491 = vpop.f32.mrf.mxu0
        %v1492 = vadd.f32 %v1427, %v1491
        %1493 = vdwg.mxu0
        %1494 = vmatpush.msra.mxu0 %v1300
        %1495 = vmatpush.msra.mxu0 %v1299
        %1496 = vmatpush.msra.mxu0 %v1298
        %1497 = vmatpush.msra.mxu0 %v1297
        %1498 = vmatpush.msra.mxu0 %v1296
        %1499 = vmatpush.msra.mxu0 %v1295
        %1500 = vmatpush.msra.mxu0 %v1294
        %1501 = vmatpush.msra.mxu0 %v1293
        %1502 = vmatpush.msra.mxu0 %v1292
        %1503 = vmatpush.msra.mxu0 %v1291
        %1504 = vmatpush.msra.mxu0 %v1290
        %1505 = vmatpush.msra.mxu0 %v1289
        %1506 = vmatpush.msra.mxu0 %v1288
        %1507 = vmatpush.msra.mxu0 %v1287
        %1508 = vmatpush.msra.mxu0 %v1286
        %1509 = vmatpush.msra.mxu0 %v1285
        %1510 = vmatmul.f32.gmra.mxu0 %v1302
        %v1511 = vpop.f32.mrf.mxu0
        %v1512 = vadd.f32 %v1447, %v1511
        %1513 = vmatmul.f32.gmra.mxu0 %v1304
        %v1514 = vpop.f32.mrf.mxu0
        %v1515 = vadd.f32 %v1450, %v1514
        %1516 = vmatmul.f32.gmra.mxu0 %v1306
        %v1517 = vpop.f32.mrf.mxu0
        %v1518 = vadd.f32 %v1453, %v1517
        %1519 = vmatmul.f32.gmra.mxu0 %v1308
        %v1520 = vpop.f32.mrf.mxu0
        %v1521 = vadd.f32 %v1456, %v1520
        %1522 = vmatmul.f32.gmra.mxu0 %v1310
        %v1523 = vpop.f32.mrf.mxu0
        %v1524 = vadd.f32 %v1459, %v1523
        %1525 = vmatmul.f32.gmra.mxu0 %v1312
        %v1526 = vpop.f32.mrf.mxu0
        %v1527 = vadd.f32 %v1462, %v1526
        %1528 = vmatmul.f32.gmra.mxu0 %v1314
        %v1529 = vpop.f32.mrf.mxu0
        %v1530 = vadd.f32 %v1465, %v1529
        %1531 = vmatmul.f32.gmra.mxu0 %v1316
        %v1532 = vpop.f32.mrf.mxu0
        %v1533 = vadd.f32 %v1468, %v1532
        %1534 = vmatmul.f32.gmra.mxu0 %v1318
        %v1535 = vpop.f32.mrf.mxu0
        %v1536 = vadd.f32 %v1471, %v1535
        %1537 = vmatmul.f32.gmra.mxu0 %v1320
        %v1538 = vpop.f32.mrf.mxu0
        %v1539 = vadd.f32 %v1474, %v1538
        %1540 = vmatmul.f32.gmra.mxu0 %v1322
        %v1541 = vpop.f32.mrf.mxu0
        %v1542 = vadd.f32 %v1477, %v1541
        %1543 = vmatmul.f32.gmra.mxu0 %v1324
        %v1544 = vpop.f32.mrf.mxu0
        %v1545 = vadd.f32 %v1480, %v1544
        %1546 = vmatmul.f32.gmra.mxu0 %v1326
        %v1547 = vpop.f32.mrf.mxu0
        %v1548 = vadd.f32 %v1483, %v1547
        %1549 = vmatmul.f32.gmra.mxu0 %v1328
        %v1550 = vpop.f32.mrf.mxu0
        %v1551 = vadd.f32 %v1486, %v1550
        %1552 = vmatmul.f32.gmra.mxu0 %v1330
        %v1553 = vpop.f32.mrf.mxu0
        %v1554 = vadd.f32 %v1489, %v1553
        %1555 = vmatmul.f32.gmra.mxu0 %v1332
        %v1556 = vpop.f32.mrf.mxu0
        %v1557 = vadd.f32 %v1492, %v1556
        %1558 = vdwg.mxu0
        %v1559 = vmax.f32 %v1512, 0.0
        %v1560 = vmax.f32 %v1515, 0.0
        %v1561 = vmax.f32 %v1518, 0.0
        %v1562 = vmax.f32 %v1521, 0.0
        %v1563 = vmax.f32 %v1524, 0.0
        %v1564 = vmax.f32 %v1527, 0.0
        %v1565 = vmax.f32 %v1530, 0.0
        %v1566 = vmax.f32 %v1533, 0.0
        %v1567 = vmax.f32 %v1536, 0.0
        %v1568 = vmax.f32 %v1539, 0.0
        %v1569 = vmax.f32 %v1542, 0.0
        %v1570 = vmax.f32 %v1545, 0.0
        %v1571 = vmax.f32 %v1548, 0.0
        %v1572 = vmax.f32 %v1551, 0.0
        %v1573 = vmax.f32 %v1554, 0.0
        %v1574 = vmax.f32 %v1557, 0.0
        %v1575 = vld [vmem:[%s9] sm:$0xff]
        %v1576 = vld [vmem:[%s9 + $0x8] sm:$0xff]
        %v1577 = vld [vmem:[%s9 + $0x10] sm:$0xff]
        %v1578 = vld [vmem:[%s9 + $0x18] sm:$0xff]
        %v1579 = vld [vmem:[%s9 + $0x20] sm:$0xff]
        %v1580 = vld [vmem:[%s9 + $0x28] sm:$0xff]
        %v1581 = vld [vmem:[%s9 + $0x30] sm:$0xff]
        %v1582 = vld [vmem:[%s9 + $0x38] sm:$0xff]
        %v1583 = vld [vmem:[%s10] sm:$0xff]
        %v1584 = vld [vmem:[%s10 + $0x8] sm:$0xff]
        %v1585 = vld [vmem:[%s10 + $0x10] sm:$0xff]
        %v1586 = vld [vmem:[%s10 + $0x18] sm:$0xff]
        %v1587 = vld [vmem:[%s10 + $0x20] sm:$0xff]
        %v1588 = vld [vmem:[%s10 + $0x28] sm:$0xff]
        %v1589 = vld [vmem:[%s10 + $0x30] sm:$0xff]
        %v1590 = vld [vmem:[%s10 + $0x38] sm:$0xff]
        %1592 = vset.pattern.permute.xlu0 0
        %1593 = vperm.xlu0 %1592, %v1583
        %v1594 = vpop.permute.xlu0 %1593
        %1597 = vset.pattern.permute.xlu0 0
        %1598 = vperm.xlu0 %1597, %v1584
        %v1599 = vpop.permute.xlu0 %1598
        %1602 = vset.pattern.permute.xlu0 0
        %1603 = vperm.xlu0 %1602, %v1585
        %v1604 = vpop.permute.xlu0 %1603
        %1607 = vset.pattern.permute.xlu0 0
        %1608 = vperm.xlu0 %1607, %v1586
        %v1609 = vpop.permute.xlu0 %1608
        %1612 = vset.pattern.permute.xlu0 0
        %1613 = vperm.xlu0 %1612, %v1587
        %v1614 = vpop.permute.xlu0 %1613
        %1617 = vset.pattern.permute.xlu0 0
        %1618 = vperm.xlu0 %1617, %v1588
        %v1619 = vpop.permute.xlu0 %1618
        %1622 = vset.pattern.permute.xlu0 0
        %1623 = vperm.xlu0 %1622, %v1589
        %v1624 = vpop.permute.xlu0 %1623
        %1627 = vset.pattern.permute.xlu0 0
        %1628 = vperm.xlu0 %1627, %v1590
        %v1629 = vpop.permute.xlu0 %1628
        %1631 = vmatpush.msra.mxu0 %v1574
        %1632 = vmatpush.msra.mxu0 %v1573
        %1633 = vmatpush.msra.mxu0 %v1572
        %1634 = vmatpush.msra.mxu0 %v1571
        %1635 = vmatpush.msra.mxu0 %v1570
        %1636 = vmatpush.msra.mxu0 %v1569
        %1637 = vmatpush.msra.mxu0 %v1568
        %1638 = vmatpush.msra.mxu0 %v1567
        %1639 = vmatpush.msra.mxu0 %v1566
        %1640 = vmatpush.msra.mxu0 %v1565
        %1641 = vmatpush.msra.mxu0 %v1564
        %1642 = vmatpush.msra.mxu0 %v1563
        %1643 = vmatpush.msra.mxu0 %v1562
        %1644 = vmatpush.msra.mxu0 %v1561
        %1645 = vmatpush.msra.mxu0 %v1560
        %1646 = vmatpush.msra.mxu0 %v1559
        %1647 = vmatmul.f32.gmra.mxu0 %v1575
        %v1648 = vpop.f32.mrf.mxu0
        %v1649 = vadd.f32 %v1594, %v1648
        %1650 = vmatmul.f32.gmra.mxu0 %v1576
        %v1651 = vpop.f32.mrf.mxu0
        %v1652 = vadd.f32 %v1599, %v1651
        %1653 = vmatmul.f32.gmra.mxu0 %v1577
        %v1654 = vpop.f32.mrf.mxu0
        %v1655 = vadd.f32 %v1604, %v1654
        %1656 = vmatmul.f32.gmra.mxu0 %v1578
        %v1657 = vpop.f32.mrf.mxu0
        %v1658 = vadd.f32 %v1609, %v1657
        %1659 = vmatmul.f32.gmra.mxu0 %v1579
        %v1660 = vpop.f32.mrf.mxu0
        %v1661 = vadd.f32 %v1614, %v1660
        %1662 = vmatmul.f32.gmra.mxu0 %v1580
        %v1663 = vpop.f32.mrf.mxu0
        %v1664 = vadd.f32 %v1619, %v1663
        %1665 = vmatmul.f32.gmra.mxu0 %v1581
        %v1666 = vpop.f32.mrf.mxu0
        %v1667 = vadd.f32 %v1624, %v1666
        %1668 = vmatmul.f32.gmra.mxu0 %v1582
        %v1669 = vpop.f32.mrf.mxu0
        %v1670 = vadd.f32 %v1629, %v1669
        %1671 = vdwg.mxu0
        %v1672 = vmax.f32 %v1649, 0.0
        %v1673 = vmax.f32 %v1652, 0.0
        %v1674 = vmax.f32 %v1655, 0.0
        %v1675 = vmax.f32 %v1658, 0.0
        %v1676 = vmax.f32 %v1661, 0.0
        %v1677 = vmax.f32 %v1664, 0.0
        %v1678 = vmax.f32 %v1667, 0.0
        %v1679 = vmax.f32 %v1670, 0.0
        %v1680 = vld [vmem:[%s11] sm:$0xff]
        %v1681 = vld [vmem:[%s11 + $0x8] sm:$0xff]
        %v1682 = vld [vmem:[%s11 + $0x10] sm:$0xff]
        %v1683 = vld [vmem:[%s11 + $0x18] sm:$0xff]
        %v1684 = vld [vmem:[%s12] sm:$0xff]
        %v1685 = vld [vmem:[%s12 + $0x8] sm:$0xff]
        %v1686 = vld [vmem:[%s12 + $0x10] sm:$0xff]
        %v1687 = vld [vmem:[%s12 + $0x18] sm:$0xff]
        %1689 = vset.pattern.permute.xlu0 0
        %1690 = vperm.xlu0 %1689, %v1684
        %v1691 = vpop.permute.xlu0 %1690
        %1694 = vset.pattern.permute.xlu0 0
        %1695 = vperm.xlu0 %1694, %v1685
        %v1696 = vpop.permute.xlu0 %1695
        %1699 = vset.pattern.permute.xlu0 0
        %1700 = vperm.xlu0 %1699, %v1686
        %v1701 = vpop.permute.xlu0 %1700
        %1704 = vset.pattern.permute.xlu0 0
        %1705 = vperm.xlu0 %1704, %v1687
        %v1706 = vpop.permute.xlu0 %1705
        %v1709 = vsel %vm802, %v1680, 0
        %v1712 = vsel %vm802, %v1681, 0
        %v1715 = vsel %vm802, %v1682, 0
        %v1718 = vsel %vm802, %v1683, 0
        %1720 = vmatpush.msra.mxu0 0.0
        %1721 = vmatpush.msra.mxu0 0.0
        %1722 = vmatpush.msra.mxu0 0.0
        %1723 = vmatpush.msra.mxu0 0.0
        %1724 = vmatpush.msra.mxu0 0.0
        %1725 = vmatpush.msra.mxu0 0.0
        %1726 = vmatpush.msra.mxu0 0.0
        %1727 = vmatpush.msra.mxu0 0.0
        %1728 = vmatpush.msra.mxu0 %v1679
        %1729 = vmatpush.msra.mxu0 %v1678
        %1730 = vmatpush.msra.mxu0 %v1677
        %1731 = vmatpush.msra.mxu0 %v1676
        %1732 = vmatpush.msra.mxu0 %v1675
        %1733 = vmatpush.msra.mxu0 %v1674
        %1734 = vmatpush.msra.mxu0 %v1673
        %1735 = vmatpush.msra.mxu0 %v1672
        %1736 = vmatmul.f32.gmra.mxu0 %v1709
        %v1737 = vpop.f32.mrf.mxu0
        %v1738 = vadd.f32 %v1691, %v1737
        %1739 = vmatmul.f32.gmra.mxu0 %v1712
        %v1740 = vpop.f32.mrf.mxu0
        %v1741 = vadd.f32 %v1696, %v1740
        %1742 = vmatmul.f32.gmra.mxu0 %v1715
        %v1743 = vpop.f32.mrf.mxu0
        %v1744 = vadd.f32 %v1701, %v1743
        %1745 = vmatmul.f32.gmra.mxu0 %v1718
        %v1746 = vpop.f32.mrf.mxu0
        %v1747 = vadd.f32 %v1706, %v1746
        %1748 = vdwg.mxu0
        %v1749 = vmax.f32 %v1738, 0.0
        %v1750 = vmax.f32 %v1741, 0.0
        %v1751 = vmax.f32 %v1744, 0.0
        %v1752 = vmax.f32 %v1747, 0.0
        %v1753 = vld [vmem:[%s13] sm:$0xff]
        %v1754 = vld [vmem:[%s13 + $0x8] sm:$0xff]
        %v1755 = vld [vmem:[%s13 + $0x10] sm:$0xff]
        %v1756 = vld [vmem:[%s13 + $0x18] sm:$0xff]
        %1758 = vset.pattern.permute.xlu0 0
        %1759 = vperm.xlu0 %1758, %v1753
        %v1760 = vpop.permute.xlu0 %1759
        %1763 = vset.pattern.permute.xlu0 0
        %1764 = vperm.xlu0 %1763, %v1754
        %v1765 = vpop.permute.xlu0 %1764
        %1768 = vset.pattern.permute.xlu0 0
        %1769 = vperm.xlu0 %1768, %v1755
        %v1770 = vpop.permute.xlu0 %1769
        %1773 = vset.pattern.permute.xlu0 0
        %1774 = vperm.xlu0 %1773, %v1756
        %v1775 = vpop.permute.xlu0 %1774
        %v1777 = vmul.f32 %v1760, %v1749
        %v1778 = vmul.f32 %v1765, %v1750
        %v1779 = vmul.f32 %v1770, %v1751
        %v1780 = vmul.f32 %v1775, %v1752
        %v1781 = vadd.f32 %v1777, %v1778
        %v1782 = vadd.f32 %v1781, %v1779
        %v1783 = vadd.f32 %v1782, %v1780
        %v1784 = vrot.slane %v1783, 4
        %v1785 = vadd.f32 %v1783, %v1784
        %v1786 = vrot.slane %v1785, 2
        %v1787 = vadd.f32 %v1785, %v1786
        %v1788 = vrot.slane %v1787, 1
        %v1789 = vadd.f32 %v1787, %v1788
        %v1790 = vld [vmem:[#allocation2] sm:$0x1]
        %1792 = vset.pattern.permute.xlu0 0
        %1793 = vperm.xlu0 %1792, %v1790
        %v1794 = vpop.permute.xlu0 %1793
        %v1796 = vperm.slane %v1794, 0
        %v1797 = vadd.f32 %v1789, %v1796
        %1798 = vst [vmem:[%s489] sm:$0x1] %v1797
        %s1799 = sand.u32 %s359, 1
        %s1800 = scalar_lea.sflag [#allocation4], %s1799
        %s1801 = sand.u32 %s359, 1
        %s1802 = scalar_lea.vmem [#allocation3], %s1801
        // Predicated region
        $region81: #{tpu_custom_call.1} parent=79 // pred_check
          %p1803 = pneg %p369
        $region82: #{tpu_custom_call.1} parent=79 // pred_check_branch
          %1805 = sbr.rel (%p1803) target = $region84
        $region83: #{tpu_custom_call.1} parent=79 // pred_region
          %1807 = vsyncadd %s1800, 0
          %s1808 = scalar_lea.hbm %s15, %s31
          %s1810 = sshll.u32 %s1802, 4
          %s1811 = int_to_ptr.vmem [resolvable:$true] %s1810
          %s1812 = sshll.u32 %s1808, 4
          %s1813 = int_to_ptr.hbm [resolvable:$true] %s1812
          %1815 = dma.vmem_to_hbm [thread:$0]  %s1811, 16, %s1813, %s1800
        $region84: #{tpu_custom_call.1} parent=79 // pred_fallthru
          _
      $region80: #{tpu_custom_call.1} parent=5 // pred_fallthru
        _
      %p1816 = scmp.le.s32.totalorder 2, %s26
      // Predicated region
      $region85: #{tpu_custom_call.1} parent=5 // pred_check
        %p1817 = pneg %p1816
      $region86: #{tpu_custom_call.1} parent=5 // pred_check_branch
        %1819 = sbr.rel (%p1817) target = $region88
      $region87: #{tpu_custom_call.1} parent=5 // pred_region
        %s1820 = ssub.s32 %s26, 2
        // Predicated region
        $region89: #{tpu_custom_call.1} parent=87 // pred_check
          %p1821 = pneg %p375
        $region90: #{tpu_custom_call.1} parent=87 // pred_check_branch
          %1823 = sbr.rel (%p1821) target = $region92
        $region91: #{tpu_custom_call.1} parent=87 // pred_region
          %s1824 = sand.u32 %s360, 1
          %s1825 = scalar_lea.sflag [#allocation4], %s1824
          %s1826 = sand.u32 %s360, 1
          %s1827 = scalar_lea.vmem [#allocation3], %s1826
          %1829 = dma.done %s1825, 16
        $region92: #{tpu_custom_call.1} parent=87 // pred_fallthru
          _
      $region88: #{tpu_custom_call.1} parent=5 // pred_fallthru
        _
    $region6: #{tpu_custom_call.1} parent=1 // loop_footer
      %s30 = sadd.s32 1, %s26
    $region7: #{tpu_custom_call.1} parent=1 // loop_footer_branch
      %25 = sbr.rel target = $region3
    $region8: #{tpu_custom_call.1} parent=1 // loop_exit
      _
    %1830 = vsyncpa [#allocation4], 1
    %s1831 = scalar_lea.sflag [#allocation4], 1
    %1832 = vsyncpa %s1831, 1

</llo_original>
